<compile_context>
chip_gen: v6e
topology: v6e:2x2x1
jax: 0.10.0
libtpu: 0.0.40
codegen_flags: <defaults>
</compile_context>

<pallas_src>
import math

import jax
import jax.numpy as jnp
from jax.experimental import pallas as pl
from jax.experimental.pallas import tpu as pltpu


def _pick_tile(dim, candidates):
    """Largest candidate that evenly divides dim, else the full dim."""
    for c in candidates:
        if dim % c == 0:
            return c
    return dim


def _vmem_capacity_bytes():
    """Per-core VMEM (v5e/v6e: 128 MiB, v7x: 64 MiB); conservative fallback."""
    try:
        return int(pltpu.get_tpu_info().vmem_capacity_bytes)
    except Exception:
        return 64 * 1024 * 1024


# ----------------------------------------------------------------------------
# Kernel 1: fused Q/K/V projection  (x loaded once, three MXU matmuls)
# ----------------------------------------------------------------------------
def _make_qkv_kernel(precision):
    def kernel(x_ref, wq_ref, wk_ref, wv_ref, bq_ref, bk_ref, bv_ref,
               q_ref, k_ref, v_ref):
        x = x_ref[...]

        def proj(w_ref, b_ref):
            return (jnp.dot(x, w_ref[...], preferred_element_type=jnp.float32,
                            precision=precision) + b_ref[...])

        q_ref[...] = proj(wq_ref, bq_ref).astype(q_ref.dtype)
        k_ref[...] = proj(wk_ref, bk_ref).astype(k_ref.dtype)
        v_ref[...] = proj(wv_ref, bv_ref).astype(v_ref.dtype)

    return kernel


def pallas_qkv_proj(x2d, wq, wk, wv, bq, bk, bv, *, vmem_limit):
    """x2d: [M, K]; w*: [K, N]; b*: [N] f32  ->  (q, k, v) each [M, N] f32."""
    M, K = x2d.shape
    N = wq.shape[1]
    tm = _pick_tile(M, (256, 128, 64, 32, 16, 8))
    precision = (jax.lax.Precision.HIGHEST if x2d.dtype == jnp.float32
                 else jax.lax.Precision.DEFAULT)
    kernel = _make_qkv_kernel(precision)
    out_sd = jax.ShapeDtypeStruct((M, N), jnp.float32)
    bq2 = bq.reshape(1, N).astype(jnp.float32)
    bk2 = bk.reshape(1, N).astype(jnp.float32)
    bv2 = bv.reshape(1, N).astype(jnp.float32)

    wsize = wq.dtype.itemsize
    xsize = x2d.dtype.itemsize
    # Weight-stationary estimate (weights conservatively counted double-buffered).
    resident_bytes = (2 * 3 * K * N * wsize
                      + 2 * tm * K * xsize
                      + 2 * 3 * tm * N * 4)

    if resident_bytes <= int(0.7 * vmem_limit):
        # Weights stay resident in VMEM; only the M axis is swept, so each
        # weight matrix is read from HBM exactly once.
        x_spec = pl.BlockSpec((tm, K), lambda i: (i, 0))
        w_spec = pl.BlockSpec((K, N), lambda i: (0, 0))
        b_spec = pl.BlockSpec((1, N), lambda i: (0, 0))
        o_spec = pl.BlockSpec((tm, N), lambda i: (i, 0))
        grid = (M // tm,)
        dims = ("parallel",)
    else:
        # Fallback: 2-D grid with the N axis outermost so weight tiles are only
        # re-fetched when the N block changes (not per M tile).
        tn = _pick_tile(N, (512, 256, 128))
        x_spec = pl.BlockSpec((tm, K), lambda j, i: (i, 0))
        w_spec = pl.BlockSpec((K, tn), lambda j, i: (0, j))
        b_spec = pl.BlockSpec((1, tn), lambda j, i: (0, j))
        o_spec = pl.BlockSpec((tm, tn), lambda j, i: (i, j))
        grid = (N // tn, M // tm)
        dims = ("parallel", "parallel")

    return pl.pallas_call(
        kernel,
        out_shape=(out_sd, out_sd, out_sd),
        grid=grid,
        in_specs=[x_spec, w_spec, w_spec, w_spec, b_spec, b_spec, b_spec],
        out_specs=(o_spec, o_spec, o_spec),
        compiler_params=pltpu.CompilerParams(
            dimension_semantics=dims, vmem_limit_bytes=vmem_limit),
    )(x2d, wq, wk, wv, bq2, bk2, bv2)


# ----------------------------------------------------------------------------
# Kernel 2: dense layer  y = x @ W + b   (output projection)
# ----------------------------------------------------------------------------
def _make_linear_kernel(precision):
    def kernel(x_ref, w_ref, b_ref, o_ref):
        o_ref[...] = (jnp.dot(x_ref[...], w_ref[...],
                              preferred_element_type=jnp.float32,
                              precision=precision)
                      + b_ref[...]).astype(o_ref.dtype)
    return kernel


def pallas_linear(x2d, w, b, *, vmem_limit):
    """x2d: [M, K], w: [K, N], b: [N] f32 -> [M, N] f32."""
    M, K = x2d.shape
    N = w.shape[1]
    tm = _pick_tile(M, (256, 128, 64, 32, 16, 8))
    precision = (jax.lax.Precision.HIGHEST if x2d.dtype == jnp.float32
                 else jax.lax.Precision.DEFAULT)
    kernel = _make_linear_kernel(precision)
    b2 = b.reshape(1, N).astype(jnp.float32)

    resident_bytes = (2 * K * N * w.dtype.itemsize
                      + 2 * tm * K * x2d.dtype.itemsize
                      + 2 * tm * N * 4)

    if resident_bytes <= int(0.7 * vmem_limit):
        grid = (M // tm,)
        in_specs = [pl.BlockSpec((tm, K), lambda i: (i, 0)),
                    pl.BlockSpec((K, N), lambda i: (0, 0)),
                    pl.BlockSpec((1, N), lambda i: (0, 0))]
        out_spec = pl.BlockSpec((tm, N), lambda i: (i, 0))
        dims = ("parallel",)
    else:
        tn = _pick_tile(N, (512, 256, 128))
        grid = (N // tn, M // tm)
        in_specs = [pl.BlockSpec((tm, K), lambda j, i: (i, 0)),
                    pl.BlockSpec((K, tn), lambda j, i: (0, j)),
                    pl.BlockSpec((1, tn), lambda j, i: (0, j))]
        out_spec = pl.BlockSpec((tm, tn), lambda j, i: (i, j))
        dims = ("parallel", "parallel")

    return pl.pallas_call(
        kernel,
        out_shape=jax.ShapeDtypeStruct((M, N), jnp.float32),
        grid=grid, in_specs=in_specs, out_specs=out_spec,
        compiler_params=pltpu.CompilerParams(
            dimension_semantics=dims, vmem_limit_bytes=vmem_limit),
    )(x2d, w, b2)


# ----------------------------------------------------------------------------
# Kernel 3: KV-tiled quadratic-inhibitor attention core (all heads per block)
#   coef/bias are pre-folded:   z_ij   = ||q'_i - k'_j||^2        (per head)
#                               ctx_id = sum_j relu(v'_jd - z_ij) (per head)
# ----------------------------------------------------------------------------
def _make_inhibitor_kernel(num_heads, head_dim, inner_dtype):
    def kernel(q_ref, kt_ref, vt_ref, o_ref, acc_ref, sqq_ref):
        kv = pl.program_id(2)
        q = q_ref[0]            # [tq,  H]  (sqrt(coef) folded into the proj)
        kt = kt_ref[0]          # [H, tkv]  (per-head slice is [Dh, tkv])
        vt = vt_ref[0]          # [H, tkv]  (bias folded into the proj)

        @pl.when(kv == 0)
        def _init():
            acc_ref[...] = jnp.zeros_like(acc_ref)
            # ||q_i||^2 is constant across the kv grid axis — hoist it.
            for h in range(num_heads):
                q_h = q[:, h * head_dim:(h + 1) * head_dim]
                sqq_ref[:, h:h + 1] = jnp.sum(q_h * q_h, axis=-1,
                                              keepdims=True)

        for h in range(num_heads):
            sl = slice(h * head_dim, (h + 1) * head_dim)
            q_h = q[:, sl]                     # [tq, Dh]
            kt_h = kt[sl, :]                   # [Dh, tkv]  (no in-kernel .T)
            vt_h = vt[sl, :]                   # [Dh, tkv]

            # ||q'-k'||^2 via the MXU expansion.  HIGHEST precision on the dot
            # keeps the cancellation-prone expansion close to the reference's
            # direct (q-k)^2 sum; the clamp only absorbs tiny negative noise.
            sq_q = sqq_ref[:, h:h + 1]                              # [tq, 1]
            sq_k = jnp.sum(kt_h * kt_h, axis=0, keepdims=True)      # [1, tkv]
            qk = jnp.dot(q_h, kt_h, preferred_element_type=jnp.float32,
                         precision=jax.lax.Precision.HIGHEST)       # [tq,tkv]
            z = jnp.maximum(sq_q + sq_k - 2.0 * qk, 0.0)            # [tq,tkv]

            # Dominant VPU work on a lane-dense [tq, Dh, tkv] tile; optionally
            # bf16 (2x packed VPU rate on v6e/v7x), reduced/accumulated in f32.
            vt_w = vt_h.astype(inner_dtype)
            z_w = z.astype(inner_dtype)
            inhibited = jnp.maximum(vt_w[None, :, :] - z_w[:, None, :], 0)
            part = jnp.sum(inhibited.astype(jnp.float32), axis=-1)  # [tq, Dh]

            # Accumulate straight into the output slice: only one [tq, Dh]
            # partial is ever live (no parts list / concatenate).
            acc_ref[:, sl] += part

        @pl.when(kv == pl.num_programs(2) - 1)
        def _finalize():
            o_ref[0] = acc_ref[...].astype(o_ref.dtype)

    return kernel


def pallas_inhibitor(q3, kt3, vt3, num_heads, *, vmem_limit, inner_dtype,
                     out_dtype):
    """q3: [B, S, H] f32 (heads packed); kt3/vt3: [B, H, S] f32."""
    B, S, H = q3.shape
    head_dim = H // num_heads

    big_vmem = vmem_limit >= 80 * 1024 * 1024
    cands = (256, 128, 64, 32, 16, 8) if big_vmem else (128, 64, 32, 16, 8)
    tq = _pick_tile(S, cands)
    # Keep the materialized [tq, Dh, tkv] work tile comfortably inside VMEM.
    work_itemsize = 2 if inner_dtype == jnp.bfloat16 else 4
    tile_budget = 16 * 1024 * 1024
    tkv = None
    for c in cands:
        if S % c == 0 and tq * head_dim * c * work_itemsize <= tile_budget:
            tkv = c
            break
    if tkv is None:
        tkv = _pick_tile(S, (64, 32, 16, 8))

    kernel = _make_inhibitor_kernel(num_heads, head_dim, inner_dtype)
    q_spec = pl.BlockSpec((1, tq, H), lambda b, qi, ki: (b, qi, 0))
    kv_spec = pl.BlockSpec((1, H, tkv), lambda b, qi, ki: (b, 0, ki))
    o_spec = pl.BlockSpec((1, tq, H), lambda b, qi, ki: (b, qi, 0))

    return pl.pallas_call(
        kernel,
        out_shape=jax.ShapeDtypeStruct((B, S, H), out_dtype),
        grid=(B, S // tq, S // tkv),
        in_specs=[q_spec, kv_spec, kv_spec],
        out_specs=o_spec,
        scratch_shapes=[pltpu.VMEM((tq, H), jnp.float32),
                        pltpu.VMEM((tq, num_heads), jnp.float32)],
        compiler_params=pltpu.CompilerParams(
            dimension_semantics=("parallel", "parallel", "arbitrary"),
            vmem_limit_bytes=vmem_limit),
    )(q3, kt3, vt3)


# ----------------------------------------------------------------------------
# Full module forward
# ----------------------------------------------------------------------------
def quadratic_inhibitor_attention(hidden_states, params, *, use_bf16=False):
    B, S, H = hidden_states.shape
    N = params["num_heads"]
    Dh = H // N

    cap = _vmem_capacity_bytes()
    vmem_limit = max(32 * 1024 * 1024,
                     min(int(0.75 * cap), 96 * 1024 * 1024))

    gamma = params["gamma"].astype(jnp.float32)        # shape (1,)
    scale = gamma * math.sqrt(Dh)                      # gamma * sqrt(d_head)
    coef = 15.0 / (16.0 * scale)
    bias = (3.0 * Dh / 16.0) / scale
    # Fold coef into Q/K (scale by sqrt(coef)) and bias into V so the inner
    # kernel is relu(v' - ||q'-k'||^2) with no scalar plumbing.
    # TODO(synk): folding assumes gamma > 0 (true for the module's init).
    sqrt_coef = jnp.sqrt(coef)
    wq = params["wq"] * sqrt_coef
    bq = params["bq"] * sqrt_coef
    wk = params["wk"] * sqrt_coef
    bk = params["bk"] * sqrt_coef
    wv = params["wv"]
    bv = params["bv"] - bias
    wo = params["wo"]
    bo = params["bo"]

    x2d = hidden_states.reshape(B * S, H).astype(jnp.float32)
    if use_bf16:
        # bf16 matmul inputs: native MXU rate + half the x/W HBM bytes.
        x2d = x2d.astype(jnp.bfloat16)
        wq, wk, wv, wo = (w.astype(jnp.bfloat16) for w in (wq, wk, wv, wo))

    # Fused Q/K/V projection (one launch, x read once, weight-stationary).
    q2d, k2d, v2d = pallas_qkv_proj(x2d, wq, wk, wv, bq, bk, bv,
                                    vmem_limit=vmem_limit)

    # Q keeps heads packed [B, S, H]; K/V pre-transposed to [B, H, S] so each
    # head's block arrives as [Dh, tkv] (no per-head XLU transposes in-kernel).
    q3 = q2d.reshape(B, S, H)
    kt3 = k2d.reshape(B, S, H).transpose(0, 2, 1)
    vt3 = v2d.reshape(B, S, H).transpose(0, 2, 1)

    inner_dtype = jnp.bfloat16 if use_bf16 else jnp.float32
    ctx_dtype = jnp.bfloat16 if use_bf16 else jnp.float32
    ctx = pallas_inhibitor(q3, kt3, vt3, N, vmem_limit=vmem_limit,
                           inner_dtype=inner_dtype, out_dtype=ctx_dtype)
    # dropout: identity (eval-mode forward)

    out = pallas_linear(ctx.reshape(B * S, H), wo, bo, vmem_limit=vmem_limit)
    return out.reshape(B, S, H)


# ----------------------------------------------------------------------------
# Pure-JAX reference (mirrors the PyTorch forward exactly)
# ----------------------------------------------------------------------------
def reference_forward(x, params):
    B, S, H = x.shape
    N = params["num_heads"]
    Dh = H // N
    hp = jax.lax.Precision.HIGHEST
    x2d = x.reshape(B * S, H)
    q = jnp.dot(x2d, params["wq"], precision=hp) + params["bq"]
    k = jnp.dot(x2d, params["wk"], precision=hp) + params["bk"]
    v = jnp.dot(x2d, params["wv"], precision=hp) + params["bv"]

    def sh(t):
        return t.reshape(B, S, N, Dh).transpose(0, 2, 1, 3)

    q4, k4, v4 = sh(q), sh(k), sh(v)
    diff = q4[:, :, :, None, :] - k4[:, :, None, :, :]      # [B,N,S,S,Dh]
    sq = jnp.sum(diff * diff, axis=-1)                       # [B,N,S,S]
    scale = params["gamma"][0] * math.sqrt(Dh)
    z = (15.0 / (16.0 * scale)) * sq + (3.0 * Dh / 16.0) / scale
    inhibited = jnp.maximum(v4[:, :, None, :, :] - z[..., None], 0.0)
    ctx = jnp.sum(inhibited, axis=3)                         # [B,N,S,Dh]
    ctx = ctx.transpose(0, 2, 1, 3).reshape(B * S, H)
    return (jnp.dot(ctx, params["wo"], precision=hp)
            + params["bo"]).reshape(B, S, H)


# ----------------------------------------------------------------------------
# Main
# ----------------------------------------------------------------------------
if __name__ == "__main__":
    B, S, H, N = 2, 8, 32, 4
    Dh = H // N

    key = jax.random.PRNGKey(0)
    keys = jax.random.split(key, 10)

    def init_w(k):
        return jax.random.normal(k, (H, H), dtype=jnp.float32) * 0.02

    def init_b(k):
        return jax.random.normal(k, (H,), dtype=jnp.float32) * 0.02

    params = {
        "num_heads": N,
        "wq": init_w(keys[0]), "bq": init_b(keys[1]),
        "wk": init_w(keys[2]), "bk": init_b(keys[3]),
        "wv": init_w(keys[4]), "bv": init_b(keys[5]),
        "wo": init_w(keys[6]), "bo": init_b(keys[7]),
        # gamma parameter initialized to sqrt(attention_head_size), shape (1,)
        "gamma": jnp.ones((1,), dtype=jnp.float32) * math.sqrt(Dh),
    }

    hidden_states = jax.random.normal(keys[8], (B, S, H), dtype=jnp.float32)

    ref = reference_forward(hidden_states, params)

    # Exact (f32) path.
    out = quadratic_inhibitor_attention(hidden_states, params, use_bf16=False)
    out = jax.block_until_ready(out)
    assert out.shape == (B, S, H)
    assert jnp.allclose(out, ref, atol=1e-4, rtol=1e-4), (
        f"f32 max abs err {jnp.max(jnp.abs(out - ref))}")

    # Fast path (bf16 matmul inputs + bf16 relu-sum work tile, f32 accumulate).
    out_fast = quadratic_inhibitor_attention(hidden_states, params,
                                             use_bf16=True)
    out_fast = jax.block_until_ready(out_fast)
    assert jnp.allclose(out_fast.astype(jnp.float32), ref,
                        atol=5e-2, rtol=5e-2), (
        f"bf16 max abs err {jnp.max(jnp.abs(out_fast.astype(jnp.float32) - ref))}")

    print("KERNEL_OK")
</pallas_src>

<mosaic_0001>
module attributes {stable_mosaic.version = 11 : i64} {
  func.func @kernel(%arg0: i32, %arg1: memref<16x32xf32, #tpu.memory_space<vmem>>, %arg2: memref<32x32xf32, #tpu.memory_space<vmem>>, %arg3: memref<32x32xf32, #tpu.memory_space<vmem>>, %arg4: memref<32x32xf32, #tpu.memory_space<vmem>>, %arg5: memref<1x32xf32, #tpu.memory_space<vmem>>, %arg6: memref<1x32xf32, #tpu.memory_space<vmem>>, %arg7: memref<1x32xf32, #tpu.memory_space<vmem>>, %arg8: memref<16x32xf32, #tpu.memory_space<vmem>>, %arg9: memref<16x32xf32, #tpu.memory_space<vmem>>, %arg10: memref<16x32xf32, #tpu.memory_space<vmem>>) attributes {dimension_semantics = [#tpu.dimension_semantics<parallel>], iteration_bounds = array<i64: 1>, scalar_prefetch = 0 : i64, scratch_operands = 0 : i64, tpu.core_type = #tpu.core_type<tc>, window_params = [{transform_indices = @transform_0, window_bounds = array<i64: 16, 32>}, {pipeline_mode = #tpu.pipeline_mode<synchronous>, transform_indices = @transform_1, window_bounds = array<i64: 32, 32>}, {pipeline_mode = #tpu.pipeline_mode<synchronous>, transform_indices = @transform_2, window_bounds = array<i64: 32, 32>}, {pipeline_mode = #tpu.pipeline_mode<synchronous>, transform_indices = @transform_3, window_bounds = array<i64: 32, 32>}, {pipeline_mode = #tpu.pipeline_mode<synchronous>, transform_indices = @transform_4, window_bounds = array<i64: 1, 32>}, {pipeline_mode = #tpu.pipeline_mode<synchronous>, transform_indices = @transform_5, window_bounds = array<i64: 1, 32>}, {pipeline_mode = #tpu.pipeline_mode<synchronous>, transform_indices = @transform_6, window_bounds = array<i64: 1, 32>}, {transform_indices = @transform_7, window_bounds = array<i64: 16, 32>}, {transform_indices = @transform_8, window_bounds = array<i64: 16, 32>}, {transform_indices = @transform_9, window_bounds = array<i64: 16, 32>}]} {
    %c0 = arith.constant 0 : index
    %c0_0 = arith.constant 0 : index
    %0 = vector.load %arg1[%c0, %c0_0] : memref<16x32xf32, #tpu.memory_space<vmem>>, vector<16x32xf32>
    %c0_1 = arith.constant 0 : index
    %c0_2 = arith.constant 0 : index
    %1 = vector.load %arg2[%c0_1, %c0_2] : memref<32x32xf32, #tpu.memory_space<vmem>>, vector<32x32xf32>
    %cst = arith.constant dense<0.000000e+00> : vector<16x32xf32>
    %2 = tpu.matmul %0, %1, %cst {dimension_numbers = #tpu.dot_dimension_numbers<[1], [0], [0], [1], [0, 0, 1, 1], [], []>, precision = #tpu.contract_precision<fp32>} : vector<16x32xf32>, vector<32x32xf32>, vector<16x32xf32> -> vector<16x32xf32>
    %c0_3 = arith.constant 0 : index
    %c0_4 = arith.constant 0 : index
    %3 = vector.load %arg5[%c0_3, %c0_4] : memref<1x32xf32, #tpu.memory_space<vmem>>, vector<1x32xf32>
    %4 = vector.broadcast %3 : vector<1x32xf32> to vector<16x32xf32>
    %5 = arith.addf %2, %4 : vector<16x32xf32>
    %c0_5 = arith.constant 0 : index
    %c0_6 = arith.constant 0 : index
    %6 = vector.load %arg8[%c0_5, %c0_6] : memref<16x32xf32, #tpu.memory_space<vmem>>, vector<16x32xf32>
    tpu.vector_store %arg8[%c0_5, %c0_6], %5 {strides = array<i32>} : memref<16x32xf32, #tpu.memory_space<vmem>>, vector<16x32xf32>,
    %c0_7 = arith.constant 0 : index
    %c0_8 = arith.constant 0 : index
    %7 = vector.load %arg3[%c0_7, %c0_8] : memref<32x32xf32, #tpu.memory_space<vmem>>, vector<32x32xf32>
    %cst_9 = arith.constant dense<0.000000e+00> : vector<16x32xf32>
    %8 = tpu.matmul %0, %7, %cst_9 {dimension_numbers = #tpu.dot_dimension_numbers<[1], [0], [0], [1], [0, 0, 1, 1], [], []>, precision = #tpu.contract_precision<fp32>} : vector<16x32xf32>, vector<32x32xf32>, vector<16x32xf32> -> vector<16x32xf32>
    %c0_10 = arith.constant 0 : index
    %c0_11 = arith.constant 0 : index
    %9 = vector.load %arg6[%c0_10, %c0_11] : memref<1x32xf32, #tpu.memory_space<vmem>>, vector<1x32xf32>
    %10 = vector.broadcast %9 : vector<1x32xf32> to vector<16x32xf32>
    %11 = arith.addf %8, %10 : vector<16x32xf32>
    %c0_12 = arith.constant 0 : index
    %c0_13 = arith.constant 0 : index
    %12 = vector.load %arg9[%c0_12, %c0_13] : memref<16x32xf32, #tpu.memory_space<vmem>>, vector<16x32xf32>
    tpu.vector_store %arg9[%c0_12, %c0_13], %11 {strides = array<i32>} : memref<16x32xf32, #tpu.memory_space<vmem>>, vector<16x32xf32>,
    %c0_14 = arith.constant 0 : index
    %c0_15 = arith.constant 0 : index
    %13 = vector.load %arg4[%c0_14, %c0_15] : memref<32x32xf32, #tpu.memory_space<vmem>>, vector<32x32xf32>
    %cst_16 = arith.constant dense<0.000000e+00> : vector<16x32xf32>
    %14 = tpu.matmul %0, %13, %cst_16 {dimension_numbers = #tpu.dot_dimension_numbers<[1], [0], [0], [1], [0, 0, 1, 1], [], []>, precision = #tpu.contract_precision<fp32>} : vector<16x32xf32>, vector<32x32xf32>, vector<16x32xf32> -> vector<16x32xf32>
    %c0_17 = arith.constant 0 : index
    %c0_18 = arith.constant 0 : index
    %15 = vector.load %arg7[%c0_17, %c0_18] : memref<1x32xf32, #tpu.memory_space<vmem>>, vector<1x32xf32>
    %16 = vector.broadcast %15 : vector<1x32xf32> to vector<16x32xf32>
    %17 = arith.addf %14, %16 : vector<16x32xf32>
    %c0_19 = arith.constant 0 : index
    %c0_20 = arith.constant 0 : index
    %18 = vector.load %arg10[%c0_19, %c0_20] : memref<16x32xf32, #tpu.memory_space<vmem>>, vector<16x32xf32>
    tpu.vector_store %arg10[%c0_19, %c0_20], %17 {strides = array<i32>} : memref<16x32xf32, #tpu.memory_space<vmem>>, vector<16x32xf32>,
    return
  }
  func.func @transform_0(%arg0: i32) -> (i32, i32) {
    %c0_i32 = arith.constant 0 : i32
    %c0_i32_0 = arith.constant 0 : i32
    return %arg0, %c0_i32 : i32, i32
  }
  func.func @transform_1(%arg0: i32) -> (i32, i32) {
    %c0_i32 = arith.constant 0 : i32
    %c0_i32_0 = arith.constant 0 : i32
    %c0_i32_1 = arith.constant 0 : i32
    return %c0_i32, %c0_i32_0 : i32, i32
  }
  func.func @transform_2(%arg0: i32) -> (i32, i32) {
    %c0_i32 = arith.constant 0 : i32
    %c0_i32_0 = arith.constant 0 : i32
    %c0_i32_1 = arith.constant 0 : i32
    return %c0_i32, %c0_i32_0 : i32, i32
  }
  func.func @transform_3(%arg0: i32) -> (i32, i32) {
    %c0_i32 = arith.constant 0 : i32
    %c0_i32_0 = arith.constant 0 : i32
    %c0_i32_1 = arith.constant 0 : i32
    return %c0_i32, %c0_i32_0 : i32, i32
  }
  func.func @transform_4(%arg0: i32) -> (i32, i32) {
    %c0_i32 = arith.constant 0 : i32
    %c0_i32_0 = arith.constant 0 : i32
    %c0_i32_1 = arith.constant 0 : i32
    return %c0_i32, %c0_i32_0 : i32, i32
  }
  func.func @transform_5(%arg0: i32) -> (i32, i32) {
    %c0_i32 = arith.constant 0 : i32
    %c0_i32_0 = arith.constant 0 : i32
    %c0_i32_1 = arith.constant 0 : i32
    return %c0_i32, %c0_i32_0 : i32, i32
  }
  func.func @transform_6(%arg0: i32) -> (i32, i32) {
    %c0_i32 = arith.constant 0 : i32
    %c0_i32_0 = arith.constant 0 : i32
    %c0_i32_1 = arith.constant 0 : i32
    return %c0_i32, %c0_i32_0 : i32, i32
  }
  func.func @transform_7(%arg0: i32) -> (i32, i32) {
    %c0_i32 = arith.constant 0 : i32
    %c0_i32_0 = arith.constant 0 : i32
    return %arg0, %c0_i32 : i32, i32
  }
  func.func @transform_8(%arg0: i32) -> (i32, i32) {
    %c0_i32 = arith.constant 0 : i32
    %c0_i32_0 = arith.constant 0 : i32
    return %arg0, %c0_i32 : i32, i32
  }
  func.func @transform_9(%arg0: i32) -> (i32, i32) {
    %c0_i32 = arith.constant 0 : i32
    %c0_i32_0 = arith.constant 0 : i32
    return %arg0, %c0_i32 : i32, i32
  }
}

</mosaic_0001>

<llo_original>
// kernel: tpu_custom_call.1
$region0: #{tpu_custom_call.1}
  #allocation0 [shape = 'u32[]', space=smem, size = 0x4, offset = 0x4, fixed_abs, tag = 'smem constant byte address 0x4 - core index']
  #allocation1 [shape = 'u32[144,128]{1,0:T(1,128)}', space=vmem, size = 0x12000, scoped, tag = 'internal scratch']
  %s0 = inlined_call_operand.hbm [shape: f32[16,32], index: 0, kind: input, shape index: {}]
  %s1 = inlined_call_operand.hbm [shape: f32[32,32], index: 1, kind: input, shape index: {}]
  %s2 = inlined_call_operand.hbm [shape: f32[32,32], index: 2, kind: input, shape index: {}]
  %s3 = inlined_call_operand.hbm [shape: f32[32,32], index: 3, kind: input, shape index: {}]
  %s4 = inlined_call_operand.vmem [shape: f32[1,32], index: 4, kind: input, shape index: {}]
  %s5 = inlined_call_operand.vmem [shape: f32[1,32], index: 5, kind: input, shape index: {}]
  %s6 = inlined_call_operand.vmem [shape: f32[1,32], index: 6, kind: input, shape index: {}]
  %s7 = inlined_call_operand.hbm [shape: f32[16,32], index: 7, kind: output, shape index: {0}]
  %s8 = inlined_call_operand.hbm [shape: f32[16,32], index: 8, kind: output, shape index: {1}]
  %s9 = inlined_call_operand.hbm [shape: f32[16,32], index: 9, kind: output, shape index: {2}]
  %10 = xla_tuple %s7, %s8, %s9
  %s11 = sld [smem:[#allocation0]]
  $region70: #{tpu_custom_call.1} parent=0
    _
  %s13 = ssub.s32 1, %s11
  %s14 = scalar_select 0, %s13, %s11
  $region1: #{tpu_custom_call.1} parent=0
    #allocation2 [shape = 'u8[8192]{0}', space=vmem, size = 0x2000, scoped, tag = 'input window, operand 0, single buffered']
    #allocation3 [shape = 's32[1]{0}', space=sflag, size = 0x4, scoped, tag = 'scoped memory for tpu_custom_call.1']
    #allocation4 [shape = 's32[1]{0}', space=sflag, size = 0x4, scoped, tag = 'scoped memory for tpu_custom_call.1']
    #allocation5 [shape = 'u8[16384]{0}', space=vmem, size = 0x4000, scoped, tag = 'input window, operand 1, single buffered']
    #allocation6 [shape = 's32[1]{0}', space=sflag, size = 0x4, scoped, tag = 'scoped memory for tpu_custom_call.1']
    #allocation7 [shape = 'u8[16384]{0}', space=vmem, size = 0x4000, scoped, tag = 'input window, operand 2, single buffered']
    #allocation8 [shape = 'u8[16384]{0}', space=vmem, size = 0x4000, scoped, tag = 'input window, operand 3, single buffered']
    #allocation9 [shape = 's32[1]{0}', space=sflag, size = 0x4, scoped, tag = 'scoped memory for tpu_custom_call.1']
    #allocation10 [shape = 'u8[8192]{0}', space=vmem, size = 0x2000, scoped, tag = 'output window, operand 0, single buffered']
    #allocation11 [shape = 'u8[8192]{0}', space=vmem, size = 0x2000, scoped, tag = 'output window, operand 1, single buffered']
    #allocation12 [shape = 's32[1]{0}', space=sflag, size = 0x4, scoped, tag = 'scoped memory for tpu_custom_call.1']
    #allocation13 [shape = 'u8[8192]{0}', space=vmem, size = 0x2000, scoped, tag = 'output window, operand 2, single buffered']
    %15 = vsyncpa [#allocation3], 0
    %16 = vsyncpa [#allocation6], 0
    %17 = vsyncpa [#allocation9], 0
    %18 = vsyncpa [#allocation4], 0
    %19 = vsyncpa [#allocation12], 0
    // Predicated region
    $region2: #{tpu_custom_call.1} parent=1 // pred_check
      _
    $region3: #{tpu_custom_call.1} parent=1 // pred_check_branch
      %21 = sbr.rel (0) target = $region5
    $region4: #{tpu_custom_call.1} parent=1 // pred_region
      %s23 = ssub.s32 256, 256
      %24 = vsyncadd [#allocation3], %s23
      %s25 = sshll.u32 [#allocation2], 4
      %s26 = int_to_ptr.vmem [resolvable:$true] %s25
      %31 = dma.hbm_to_vmem [thread:$0]  %s0, 256, %s26, [#allocation3], 128, 128, 8
    $region5: #{tpu_custom_call.1} parent=1 // pred_fallthru
      _
    // Predicated region
    $region6: #{tpu_custom_call.1} parent=1 // pred_check
      _
    $region7: #{tpu_custom_call.1} parent=1 // pred_check_branch
      %33 = sbr.rel (0) target = $region9
    $region8: #{tpu_custom_call.1} parent=1 // pred_region
      %s35 = ssub.s32 512, 512
      %36 = vsyncadd [#allocation6], %s35
      %s37 = sshll.u32 [#allocation5], 4
      %s38 = int_to_ptr.vmem [resolvable:$true] %s37
      %43 = dma.hbm_to_vmem [thread:$0]  %s1, 512, %s38, [#allocation6], 128, 128, 8
    $region9: #{tpu_custom_call.1} parent=1 // pred_fallthru
      _
    // Predicated region
    $region10: #{tpu_custom_call.1} parent=1 // pred_check
      _
    $region11: #{tpu_custom_call.1} parent=1 // pred_check_branch
      %45 = sbr.rel (0) target = $region13
    $region12: #{tpu_custom_call.1} parent=1 // pred_region
      %s47 = ssub.s32 512, 512
      %48 = vsyncadd [#allocation6], %s47
      %s49 = sshll.u32 [#allocation7], 4
      %s50 = int_to_ptr.vmem [resolvable:$true] %s49
      %55 = dma.hbm_to_vmem [thread:$0]  %s2, 512, %s50, [#allocation6], 128, 128, 8
    $region13: #{tpu_custom_call.1} parent=1 // pred_fallthru
      _
    // Predicated region
    $region14: #{tpu_custom_call.1} parent=1 // pred_check
      _
    $region15: #{tpu_custom_call.1} parent=1 // pred_check_branch
      %57 = sbr.rel (0) target = $region17
    $region16: #{tpu_custom_call.1} parent=1 // pred_region
      %s59 = ssub.s32 512, 512
      %60 = vsyncadd [#allocation9], %s59
      %s61 = sshll.u32 [#allocation8], 4
      %s62 = int_to_ptr.vmem [resolvable:$true] %s61
      %67 = dma.hbm_to_vmem [thread:$0]  %s3, 512, %s62, [#allocation9], 128, 128, 8
    $region17: #{tpu_custom_call.1} parent=1 // pred_fallthru
      _
    // Predicated region
    $region18: #{tpu_custom_call.1} parent=1 // pred_check
      _
    $region19: #{tpu_custom_call.1} parent=1 // pred_check_branch
      %69 = sbr.rel (0) target = $region21
    $region20: #{tpu_custom_call.1} parent=1 // pred_region
      _
    $region21: #{tpu_custom_call.1} parent=1 // pred_fallthru
      _
    // Predicated region
    $region22: #{tpu_custom_call.1} parent=1 // pred_check
      _
    $region23: #{tpu_custom_call.1} parent=1 // pred_check_branch
      %71 = sbr.rel (0) target = $region25
    $region24: #{tpu_custom_call.1} parent=1 // pred_region
      _
    $region25: #{tpu_custom_call.1} parent=1 // pred_fallthru
      _
    // Predicated region
    $region26: #{tpu_custom_call.1} parent=1 // pred_check
      _
    $region27: #{tpu_custom_call.1} parent=1 // pred_check_branch
      %73 = sbr.rel (0) target = $region29
    $region28: #{tpu_custom_call.1} parent=1 // pred_region
      _
    $region29: #{tpu_custom_call.1} parent=1 // pred_fallthru
      _
    // Predicated region
    $region30: #{tpu_custom_call.1} parent=1 // pred_check
      _
    $region31: #{tpu_custom_call.1} parent=1 // pred_check_branch
      %75 = sbr.rel (0) target = $region33
    $region32: #{tpu_custom_call.1} parent=1 // pred_region
      %76 = dma.done [#allocation3], 256
    $region33: #{tpu_custom_call.1} parent=1 // pred_fallthru
      _
    // Predicated region
    $region34: #{tpu_custom_call.1} parent=1 // pred_check
      _
    $region35: #{tpu_custom_call.1} parent=1 // pred_check_branch
      %78 = sbr.rel (0) target = $region37
    $region36: #{tpu_custom_call.1} parent=1 // pred_region
      %79 = dma.done [#allocation6], 512
    $region37: #{tpu_custom_call.1} parent=1 // pred_fallthru
      _
    // Predicated region
    $region38: #{tpu_custom_call.1} parent=1 // pred_check
      _
    $region39: #{tpu_custom_call.1} parent=1 // pred_check_branch
      %81 = sbr.rel (0) target = $region41
    $region40: #{tpu_custom_call.1} parent=1 // pred_region
      %82 = dma.done [#allocation6], 512
    $region41: #{tpu_custom_call.1} parent=1 // pred_fallthru
      _
    // Predicated region
    $region42: #{tpu_custom_call.1} parent=1 // pred_check
      _
    $region43: #{tpu_custom_call.1} parent=1 // pred_check_branch
      %84 = sbr.rel (0) target = $region45
    $region44: #{tpu_custom_call.1} parent=1 // pred_region
      %85 = dma.done [#allocation9], 512
    $region45: #{tpu_custom_call.1} parent=1 // pred_fallthru
      _
    %v86 = vld [vmem:[#allocation2] sm:$0xff]
    %v87 = vld [vmem:[#allocation2 + $0x8] sm:$0xff]
    %v88 = vld [vmem:[#allocation5] sm:$0xff]
    %v89 = vld [vmem:[#allocation5 + $0x8] sm:$0xff]
    %v90 = vld [vmem:[#allocation5 + $0x10] sm:$0xff]
    %v91 = vld [vmem:[#allocation5 + $0x18] sm:$0xff]
    %v92 = vld [vmem:[%s4] sm:$0x1]
    %v94 = vlaneseq
    %v95 = vshrl.u32 %v94, 7
    %v96 = vsub.s32 0, %v95
    %v97 = vrot.slane %v92, %v96
    %vm99 = vcmask 261120
    %v101 = vsel %vm99, %v86, 0
    %v104 = vsel %vm99, %v87, 0
    %106 = vmatprep.subr.mxu0 0.0
    %107 = vmatpush1.msra.mxu0 0.0
    %108 = vmatprep.subr.mxu0 0.0
    %109 = vmatpush1.msra.mxu0 0.0
    %110 = vmatprep.subr.mxu0 0.0
    %111 = vmatpush1.msra.mxu0 0.0
    %112 = vmatprep.subr.mxu0 0.0
    %113 = vmatpush1.msra.mxu0 0.0
    %114 = vmatprep.subr.mxu0 0.0
    %115 = vmatpush1.msra.mxu0 0.0
    %116 = vmatprep.subr.mxu0 0.0
    %117 = vmatpush1.msra.mxu0 0.0
    %118 = vmatprep.subr.mxu0 0.0
    %119 = vmatpush1.msra.mxu0 0.0
    %120 = vmatprep.subr.mxu0 0.0
    %121 = vmatpush1.msra.mxu0 0.0
    %122 = vmatprep.subr.mxu0 0.0
    %123 = vmatpush1.msra.mxu0 0.0
    %124 = vmatprep.subr.mxu0 0.0
    %125 = vmatpush1.msra.mxu0 0.0
    %126 = vmatprep.subr.mxu0 0.0
    %127 = vmatpush1.msra.mxu0 0.0
    %128 = vmatprep.subr.mxu0 0.0
    %129 = vmatpush1.msra.mxu0 0.0
    %130 = vmatprep.subr.mxu0 0.0
    %v131 = vand.u32 %v91, 4294901760
    %132 = vmatpush1.msra.mxu0 %v131
    %133 = vmatprep.subr.mxu0 0.0
    %v134 = vand.u32 %v90, 4294901760
    %135 = vmatpush1.msra.mxu0 %v134
    %136 = vmatprep.subr.mxu0 0.0
    %v137 = vand.u32 %v89, 4294901760
    %138 = vmatpush1.msra.mxu0 %v137
    %139 = vmatprep.subr.mxu0 0.0
    %v140 = vand.u32 %v88, 4294901760
    %141 = vmatpush1.msra.mxu0 %v140
    %142 = vmatprep.subr.mxu0 0.0
    %143 = vmatpush2.msra.mxu0 0.0
    %144 = vmatprep.subr.mxu0 0.0
    %145 = vmatpush2.msra.mxu0 0.0
    %146 = vmatprep.subr.mxu0 0.0
    %147 = vmatpush2.msra.mxu0 0.0
    %148 = vmatprep.subr.mxu0 0.0
    %149 = vmatpush2.msra.mxu0 0.0
    %150 = vmatprep.subr.mxu0 0.0
    %151 = vmatpush2.msra.mxu0 0.0
    %152 = vmatprep.subr.mxu0 0.0
    %153 = vmatpush2.msra.mxu0 0.0
    %154 = vmatprep.subr.mxu0 0.0
    %155 = vmatpush2.msra.mxu0 0.0
    %156 = vmatprep.subr.mxu0 0.0
    %157 = vmatpush2.msra.mxu0 0.0
    %158 = vmatprep.subr.mxu0 0.0
    %159 = vmatpush2.msra.mxu0 0.0
    %160 = vmatprep.subr.mxu0 0.0
    %161 = vmatpush2.msra.mxu0 0.0
    %162 = vmatprep.subr.mxu0 0.0
    %163 = vmatpush2.msra.mxu0 0.0
    %164 = vmatprep.subr.mxu0 0.0
    %165 = vmatpush2.msra.mxu0 0.0
    %166 = vmatprep.subr.mxu0 0.0
    %167 = vmatpush2.msra.mxu0 0.0
    %168 = vmatprep.subr.mxu0 0.0
    %169 = vmatpush2.msra.mxu0 0.0
    %170 = vmatprep.subr.mxu0 0.0
    %171 = vmatpush2.msra.mxu0 0.0
    %172 = vmatprep.subr.mxu0 0.0
    %173 = vmatpush2.msra.mxu0 0.0
    %174 = vmatprep.mubr.f32.mxu0 0.0
    %v175 = vand.u32 %v101, 4294901760
    %v176 = vsub.f32 %v101, %v175
    %v177 = vand.u32 %v176, 4294901760
    %v178 = vsub.f32 %v176, %v177
    %v179 = vand.u32 %v178, 4294901760
    %180 = vmatmul.mubr.f32.gmra.mxu0 %v179
    %v181 = vpop.f32.mrf.mxu0
    %v182 = vadd.f32 %v97, %v181
    %v183 = vpop.f32.mrf.mxu0
    %184 = vmatprep.mubr.f32.mxu0 0.0
    %v185 = vand.u32 %v104, 4294901760
    %v186 = vsub.f32 %v104, %v185
    %v187 = vand.u32 %v186, 4294901760
    %v188 = vsub.f32 %v186, %v187
    %v189 = vand.u32 %v188, 4294901760
    %190 = vmatmul.mubr.f32.gmra.mxu0 %v189
    %v191 = vpop.f32.mrf.mxu0
    %v192 = vadd.f32 %v97, %v191
    %v193 = vpop.f32.mrf.mxu0
    %194 = vdwg.mxu0
    %195 = vmatprep.subr.mxu0 0.0
    %196 = vmatpush1.msra.mxu0 0.0
    %197 = vmatprep.subr.mxu0 0.0
    %198 = vmatpush1.msra.mxu0 0.0
    %199 = vmatprep.subr.mxu0 0.0
    %200 = vmatpush1.msra.mxu0 0.0
    %201 = vmatprep.subr.mxu0 0.0
    %202 = vmatpush1.msra.mxu0 0.0
    %203 = vmatprep.subr.mxu0 0.0
    %204 = vmatpush1.msra.mxu0 0.0
    %205 = vmatprep.subr.mxu0 0.0
    %206 = vmatpush1.msra.mxu0 0.0
    %207 = vmatprep.subr.mxu0 0.0
    %208 = vmatpush1.msra.mxu0 0.0
    %209 = vmatprep.subr.mxu0 0.0
    %210 = vmatpush1.msra.mxu0 0.0
    %211 = vmatprep.subr.mxu0 0.0
    %212 = vmatpush1.msra.mxu0 0.0
    %213 = vmatprep.subr.mxu0 0.0
    %214 = vmatpush1.msra.mxu0 0.0
    %215 = vmatprep.subr.mxu0 0.0
    %216 = vmatpush1.msra.mxu0 0.0
    %217 = vmatprep.subr.mxu0 0.0
    %218 = vmatpush1.msra.mxu0 0.0
    %219 = vmatprep.subr.mxu0 0.0
    %v220 = vand.u32 %v91, 4294901760
    %v221 = vsub.f32 %v91, %v220
    %v222 = vand.u32 %v221, 4294901760
    %v223 = vsub.f32 %v221, %v222
    %v224 = vand.u32 %v223, 4294901760
    %225 = vmatpush1.msra.mxu0 %v224
    %226 = vmatprep.subr.mxu0 0.0
    %v227 = vand.u32 %v90, 4294901760
    %v228 = vsub.f32 %v90, %v227
    %v229 = vand.u32 %v228, 4294901760
    %v230 = vsub.f32 %v228, %v229
    %v231 = vand.u32 %v230, 4294901760
    %232 = vmatpush1.msra.mxu0 %v231
    %233 = vmatprep.subr.mxu0 0.0
    %v234 = vand.u32 %v89, 4294901760
    %v235 = vsub.f32 %v89, %v234
    %v236 = vand.u32 %v235, 4294901760
    %v237 = vsub.f32 %v235, %v236
    %v238 = vand.u32 %v237, 4294901760
    %239 = vmatpush1.msra.mxu0 %v238
    %240 = vmatprep.subr.mxu0 0.0
    %v241 = vand.u32 %v88, 4294901760
    %v242 = vsub.f32 %v88, %v241
    %v243 = vand.u32 %v242, 4294901760
    %v244 = vsub.f32 %v242, %v243
    %v245 = vand.u32 %v244, 4294901760
    %246 = vmatpush1.msra.mxu0 %v245
    %247 = vmatprep.subr.mxu0 0.0
    %248 = vmatpush2.msra.mxu0 0.0
    %249 = vmatprep.subr.mxu0 0.0
    %250 = vmatpush2.msra.mxu0 0.0
    %251 = vmatprep.subr.mxu0 0.0
    %252 = vmatpush2.msra.mxu0 0.0
    %253 = vmatprep.subr.mxu0 0.0
    %254 = vmatpush2.msra.mxu0 0.0
    %255 = vmatprep.subr.mxu0 0.0
    %256 = vmatpush2.msra.mxu0 0.0
    %257 = vmatprep.subr.mxu0 0.0
    %258 = vmatpush2.msra.mxu0 0.0
    %259 = vmatprep.subr.mxu0 0.0
    %260 = vmatpush2.msra.mxu0 0.0
    %261 = vmatprep.subr.mxu0 0.0
    %262 = vmatpush2.msra.mxu0 0.0
    %263 = vmatprep.subr.mxu0 0.0
    %264 = vmatpush2.msra.mxu0 0.0
    %265 = vmatprep.subr.mxu0 0.0
    %266 = vmatpush2.msra.mxu0 0.0
    %267 = vmatprep.subr.mxu0 0.0
    %268 = vmatpush2.msra.mxu0 0.0
    %269 = vmatprep.subr.mxu0 0.0
    %270 = vmatpush2.msra.mxu0 0.0
    %271 = vmatprep.subr.mxu0 0.0
    %272 = vmatpush2.msra.mxu0 0.0
    %273 = vmatprep.subr.mxu0 0.0
    %274 = vmatpush2.msra.mxu0 0.0
    %275 = vmatprep.subr.mxu0 0.0
    %276 = vmatpush2.msra.mxu0 0.0
    %277 = vmatprep.subr.mxu0 0.0
    %278 = vmatpush2.msra.mxu0 0.0
    %279 = vmatprep.mubr.f32.mxu0 0.0
    %v280 = vand.u32 %v101, 4294901760
    %281 = vmatmul.mubr.f32.gmra.mxu0 %v280
    %v282 = vpop.f32.mrf.mxu0
    %v283 = vadd.f32 %v182, %v282
    %v284 = vpop.f32.mrf.mxu0
    %285 = vmatprep.mubr.f32.mxu0 0.0
    %v286 = vand.u32 %v104, 4294901760
    %287 = vmatmul.mubr.f32.gmra.mxu0 %v286
    %v288 = vpop.f32.mrf.mxu0
    %v289 = vadd.f32 %v192, %v288
    %v290 = vpop.f32.mrf.mxu0
    %291 = vdwg.mxu0
    %292 = vmatprep.subr.mxu0 0.0
    %293 = vmatpush1.msra.mxu0 0.0
    %294 = vmatprep.subr.mxu0 0.0
    %295 = vmatpush1.msra.mxu0 0.0
    %296 = vmatprep.subr.mxu0 0.0
    %297 = vmatpush1.msra.mxu0 0.0
    %298 = vmatprep.subr.mxu0 0.0
    %299 = vmatpush1.msra.mxu0 0.0
    %300 = vmatprep.subr.mxu0 0.0
    %301 = vmatpush1.msra.mxu0 0.0
    %302 = vmatprep.subr.mxu0 0.0
    %303 = vmatpush1.msra.mxu0 0.0
    %304 = vmatprep.subr.mxu0 0.0
    %305 = vmatpush1.msra.mxu0 0.0
    %306 = vmatprep.subr.mxu0 0.0
    %307 = vmatpush1.msra.mxu0 0.0
    %308 = vmatprep.subr.mxu0 0.0
    %309 = vmatpush1.msra.mxu0 0.0
    %310 = vmatprep.subr.mxu0 0.0
    %311 = vmatpush1.msra.mxu0 0.0
    %312 = vmatprep.subr.mxu0 0.0
    %313 = vmatpush1.msra.mxu0 0.0
    %314 = vmatprep.subr.mxu0 0.0
    %315 = vmatpush1.msra.mxu0 0.0
    %316 = vmatprep.subr.mxu0 0.0
    %v317 = vand.u32 %v91, 4294901760
    %v318 = vsub.f32 %v91, %v317
    %319 = vmatpush1.msra.mxu0 %v318
    %320 = vmatprep.subr.mxu0 0.0
    %v321 = vand.u32 %v90, 4294901760
    %v322 = vsub.f32 %v90, %v321
    %323 = vmatpush1.msra.mxu0 %v322
    %324 = vmatprep.subr.mxu0 0.0
    %v325 = vand.u32 %v89, 4294901760
    %v326 = vsub.f32 %v89, %v325
    %327 = vmatpush1.msra.mxu0 %v326
    %328 = vmatprep.subr.mxu0 0.0
    %v329 = vand.u32 %v88, 4294901760
    %v330 = vsub.f32 %v88, %v329
    %331 = vmatpush1.msra.mxu0 %v330
    %332 = vmatprep.subr.mxu0 0.0
    %333 = vmatpush2.msra.mxu0 0.0
    %334 = vmatprep.subr.mxu0 0.0
    %335 = vmatpush2.msra.mxu0 0.0
    %336 = vmatprep.subr.mxu0 0.0
    %337 = vmatpush2.msra.mxu0 0.0
    %338 = vmatprep.subr.mxu0 0.0
    %339 = vmatpush2.msra.mxu0 0.0
    %340 = vmatprep.subr.mxu0 0.0
    %341 = vmatpush2.msra.mxu0 0.0
    %342 = vmatprep.subr.mxu0 0.0
    %343 = vmatpush2.msra.mxu0 0.0
    %344 = vmatprep.subr.mxu0 0.0
    %345 = vmatpush2.msra.mxu0 0.0
    %346 = vmatprep.subr.mxu0 0.0
    %347 = vmatpush2.msra.mxu0 0.0
    %348 = vmatprep.subr.mxu0 0.0
    %349 = vmatpush2.msra.mxu0 0.0
    %350 = vmatprep.subr.mxu0 0.0
    %351 = vmatpush2.msra.mxu0 0.0
    %352 = vmatprep.subr.mxu0 0.0
    %353 = vmatpush2.msra.mxu0 0.0
    %354 = vmatprep.subr.mxu0 0.0
    %355 = vmatpush2.msra.mxu0 0.0
    %356 = vmatprep.subr.mxu0 0.0
    %357 = vmatpush2.msra.mxu0 0.0
    %358 = vmatprep.subr.mxu0 0.0
    %359 = vmatpush2.msra.mxu0 0.0
    %360 = vmatprep.subr.mxu0 0.0
    %361 = vmatpush2.msra.mxu0 0.0
    %362 = vmatprep.subr.mxu0 0.0
    %363 = vmatpush2.msra.mxu0 0.0
    %364 = vmatprep.mubr.f32.mxu0 0.0
    %v365 = vand.u32 %v101, 4294901760
    %v366 = vsub.f32 %v101, %v365
    %367 = vmatmul.mubr.f32.gmra.mxu0 %v366
    %v368 = vpop.f32.mrf.mxu0
    %v369 = vadd.f32 %v283, %v368
    %v370 = vpop.f32.mrf.mxu0
    %371 = vmatprep.mubr.f32.mxu0 0.0
    %v372 = vand.u32 %v104, 4294901760
    %v373 = vsub.f32 %v104, %v372
    %374 = vmatmul.mubr.f32.gmra.mxu0 %v373
    %v375 = vpop.f32.mrf.mxu0
    %v376 = vadd.f32 %v289, %v375
    %v377 = vpop.f32.mrf.mxu0
    %378 = vdwg.mxu0
    %379 = vmatprep.subr.mxu0 0.0
    %380 = vmatpush1.msra.mxu0 0.0
    %381 = vmatprep.subr.mxu0 0.0
    %382 = vmatpush1.msra.mxu0 0.0
    %383 = vmatprep.subr.mxu0 0.0
    %384 = vmatpush1.msra.mxu0 0.0
    %385 = vmatprep.subr.mxu0 0.0
    %386 = vmatpush1.msra.mxu0 0.0
    %387 = vmatprep.subr.mxu0 0.0
    %388 = vmatpush1.msra.mxu0 0.0
    %389 = vmatprep.subr.mxu0 0.0
    %390 = vmatpush1.msra.mxu0 0.0
    %391 = vmatprep.subr.mxu0 0.0
    %392 = vmatpush1.msra.mxu0 0.0
    %393 = vmatprep.subr.mxu0 0.0
    %394 = vmatpush1.msra.mxu0 0.0
    %395 = vmatprep.subr.mxu0 0.0
    %396 = vmatpush1.msra.mxu0 0.0
    %397 = vmatprep.subr.mxu0 0.0
    %398 = vmatpush1.msra.mxu0 0.0
    %399 = vmatprep.subr.mxu0 0.0
    %400 = vmatpush1.msra.mxu0 0.0
    %401 = vmatprep.subr.mxu0 0.0
    %402 = vmatpush1.msra.mxu0 0.0
    %403 = vmatprep.subr.mxu0 0.0
    %v404 = vand.u32 %v91, 4294901760
    %405 = vmatpush1.msra.mxu0 %v404
    %406 = vmatprep.subr.mxu0 0.0
    %v407 = vand.u32 %v90, 4294901760
    %408 = vmatpush1.msra.mxu0 %v407
    %409 = vmatprep.subr.mxu0 0.0
    %v410 = vand.u32 %v89, 4294901760
    %411 = vmatpush1.msra.mxu0 %v410
    %412 = vmatprep.subr.mxu0 0.0
    %v413 = vand.u32 %v88, 4294901760
    %414 = vmatpush1.msra.mxu0 %v413
    %415 = vmatprep.subr.mxu0 0.0
    %416 = vmatpush2.msra.mxu0 0.0
    %417 = vmatprep.subr.mxu0 0.0
    %418 = vmatpush2.msra.mxu0 0.0
    %419 = vmatprep.subr.mxu0 0.0
    %420 = vmatpush2.msra.mxu0 0.0
    %421 = vmatprep.subr.mxu0 0.0
    %422 = vmatpush2.msra.mxu0 0.0
    %423 = vmatprep.subr.mxu0 0.0
    %424 = vmatpush2.msra.mxu0 0.0
    %425 = vmatprep.subr.mxu0 0.0
    %426 = vmatpush2.msra.mxu0 0.0
    %427 = vmatprep.subr.mxu0 0.0
    %428 = vmatpush2.msra.mxu0 0.0
    %429 = vmatprep.subr.mxu0 0.0
    %430 = vmatpush2.msra.mxu0 0.0
    %431 = vmatprep.subr.mxu0 0.0
    %432 = vmatpush2.msra.mxu0 0.0
    %433 = vmatprep.subr.mxu0 0.0
    %434 = vmatpush2.msra.mxu0 0.0
    %435 = vmatprep.subr.mxu0 0.0
    %436 = vmatpush2.msra.mxu0 0.0
    %437 = vmatprep.subr.mxu0 0.0
    %438 = vmatpush2.msra.mxu0 0.0
    %439 = vmatprep.subr.mxu0 0.0
    %440 = vmatpush2.msra.mxu0 0.0
    %441 = vmatprep.subr.mxu0 0.0
    %442 = vmatpush2.msra.mxu0 0.0
    %443 = vmatprep.subr.mxu0 0.0
    %444 = vmatpush2.msra.mxu0 0.0
    %445 = vmatprep.subr.mxu0 0.0
    %446 = vmatpush2.msra.mxu0 0.0
    %447 = vmatprep.mubr.f32.mxu0 0.0
    %v448 = vand.u32 %v101, 4294901760
    %v449 = vsub.f32 %v101, %v448
    %v450 = vand.u32 %v449, 4294901760
    %451 = vmatmul.mubr.f32.gmra.mxu0 %v450
    %v452 = vpop.f32.mrf.mxu0
    %v453 = vadd.f32 %v369, %v452
    %v454 = vpop.f32.mrf.mxu0
    %455 = vmatprep.mubr.f32.mxu0 0.0
    %v456 = vand.u32 %v104, 4294901760
    %v457 = vsub.f32 %v104, %v456
    %v458 = vand.u32 %v457, 4294901760
    %459 = vmatmul.mubr.f32.gmra.mxu0 %v458
    %v460 = vpop.f32.mrf.mxu0
    %v461 = vadd.f32 %v376, %v460
    %v462 = vpop.f32.mrf.mxu0
    %463 = vdwg.mxu0
    %464 = vmatprep.subr.mxu0 0.0
    %465 = vmatpush1.msra.mxu0 0.0
    %466 = vmatprep.subr.mxu0 0.0
    %467 = vmatpush1.msra.mxu0 0.0
    %468 = vmatprep.subr.mxu0 0.0
    %469 = vmatpush1.msra.mxu0 0.0
    %470 = vmatprep.subr.mxu0 0.0
    %471 = vmatpush1.msra.mxu0 0.0
    %472 = vmatprep.subr.mxu0 0.0
    %473 = vmatpush1.msra.mxu0 0.0
    %474 = vmatprep.subr.mxu0 0.0
    %475 = vmatpush1.msra.mxu0 0.0
    %476 = vmatprep.subr.mxu0 0.0
    %477 = vmatpush1.msra.mxu0 0.0
    %478 = vmatprep.subr.mxu0 0.0
    %479 = vmatpush1.msra.mxu0 0.0
    %480 = vmatprep.subr.mxu0 0.0
    %481 = vmatpush1.msra.mxu0 0.0
    %482 = vmatprep.subr.mxu0 0.0
    %483 = vmatpush1.msra.mxu0 0.0
    %484 = vmatprep.subr.mxu0 0.0
    %485 = vmatpush1.msra.mxu0 0.0
    %486 = vmatprep.subr.mxu0 0.0
    %487 = vmatpush1.msra.mxu0 0.0
    %488 = vmatprep.subr.mxu0 0.0
    %v489 = vand.u32 %v91, 4294901760
    %v490 = vsub.f32 %v91, %v489
    %v491 = vand.u32 %v490, 4294901760
    %492 = vmatpush1.msra.mxu0 %v491
    %493 = vmatprep.subr.mxu0 0.0
    %v494 = vand.u32 %v90, 4294901760
    %v495 = vsub.f32 %v90, %v494
    %v496 = vand.u32 %v495, 4294901760
    %497 = vmatpush1.msra.mxu0 %v496
    %498 = vmatprep.subr.mxu0 0.0
    %v499 = vand.u32 %v89, 4294901760
    %v500 = vsub.f32 %v89, %v499
    %v501 = vand.u32 %v500, 4294901760
    %502 = vmatpush1.msra.mxu0 %v501
    %503 = vmatprep.subr.mxu0 0.0
    %v504 = vand.u32 %v88, 4294901760
    %v505 = vsub.f32 %v88, %v504
    %v506 = vand.u32 %v505, 4294901760
    %507 = vmatpush1.msra.mxu0 %v506
    %508 = vmatprep.subr.mxu0 0.0
    %509 = vmatpush2.msra.mxu0 0.0
    %510 = vmatprep.subr.mxu0 0.0
    %511 = vmatpush2.msra.mxu0 0.0
    %512 = vmatprep.subr.mxu0 0.0
    %513 = vmatpush2.msra.mxu0 0.0
    %514 = vmatprep.subr.mxu0 0.0
    %515 = vmatpush2.msra.mxu0 0.0
    %516 = vmatprep.subr.mxu0 0.0
    %517 = vmatpush2.msra.mxu0 0.0
    %518 = vmatprep.subr.mxu0 0.0
    %519 = vmatpush2.msra.mxu0 0.0
    %520 = vmatprep.subr.mxu0 0.0
    %521 = vmatpush2.msra.mxu0 0.0
    %522 = vmatprep.subr.mxu0 0.0
    %523 = vmatpush2.msra.mxu0 0.0
    %524 = vmatprep.subr.mxu0 0.0
    %525 = vmatpush2.msra.mxu0 0.0
    %526 = vmatprep.subr.mxu0 0.0
    %527 = vmatpush2.msra.mxu0 0.0
    %528 = vmatprep.subr.mxu0 0.0
    %529 = vmatpush2.msra.mxu0 0.0
    %530 = vmatprep.subr.mxu0 0.0
    %531 = vmatpush2.msra.mxu0 0.0
    %532 = vmatprep.subr.mxu0 0.0
    %533 = vmatpush2.msra.mxu0 0.0
    %534 = vmatprep.subr.mxu0 0.0
    %535 = vmatpush2.msra.mxu0 0.0
    %536 = vmatprep.subr.mxu0 0.0
    %537 = vmatpush2.msra.mxu0 0.0
    %538 = vmatprep.subr.mxu0 0.0
    %539 = vmatpush2.msra.mxu0 0.0
    %540 = vmatprep.mubr.f32.mxu0 0.0
    %v541 = vand.u32 %v101, 4294901760
    %542 = vmatmul.mubr.f32.gmra.mxu0 %v541
    %v543 = vpop.f32.mrf.mxu0
    %v544 = vadd.f32 %v453, %v543
    %v545 = vpop.f32.mrf.mxu0
    %546 = vmatprep.mubr.f32.mxu0 0.0
    %v547 = vand.u32 %v104, 4294901760
    %548 = vmatmul.mubr.f32.gmra.mxu0 %v547
    %v549 = vpop.f32.mrf.mxu0
    %v550 = vadd.f32 %v461, %v549
    %v551 = vpop.f32.mrf.mxu0
    %552 = vdwg.mxu0
    %553 = vmatprep.subr.mxu0 0.0
    %554 = vmatpush1.msra.mxu0 0.0
    %555 = vmatprep.subr.mxu0 0.0
    %556 = vmatpush1.msra.mxu0 0.0
    %557 = vmatprep.subr.mxu0 0.0
    %558 = vmatpush1.msra.mxu0 0.0
    %559 = vmatprep.subr.mxu0 0.0
    %560 = vmatpush1.msra.mxu0 0.0
    %561 = vmatprep.subr.mxu0 0.0
    %562 = vmatpush1.msra.mxu0 0.0
    %563 = vmatprep.subr.mxu0 0.0
    %564 = vmatpush1.msra.mxu0 0.0
    %565 = vmatprep.subr.mxu0 0.0
    %566 = vmatpush1.msra.mxu0 0.0
    %567 = vmatprep.subr.mxu0 0.0
    %568 = vmatpush1.msra.mxu0 0.0
    %569 = vmatprep.subr.mxu0 0.0
    %570 = vmatpush1.msra.mxu0 0.0
    %571 = vmatprep.subr.mxu0 0.0
    %572 = vmatpush1.msra.mxu0 0.0
    %573 = vmatprep.subr.mxu0 0.0
    %574 = vmatpush1.msra.mxu0 0.0
    %575 = vmatprep.subr.mxu0 0.0
    %576 = vmatpush1.msra.mxu0 0.0
    %577 = vmatprep.subr.mxu0 0.0
    %v578 = vand.u32 %v91, 4294901760
    %579 = vmatpush1.msra.mxu0 %v578
    %580 = vmatprep.subr.mxu0 0.0
    %v581 = vand.u32 %v90, 4294901760
    %582 = vmatpush1.msra.mxu0 %v581
    %583 = vmatprep.subr.mxu0 0.0
    %v584 = vand.u32 %v89, 4294901760
    %585 = vmatpush1.msra.mxu0 %v584
    %586 = vmatprep.subr.mxu0 0.0
    %v587 = vand.u32 %v88, 4294901760
    %588 = vmatpush1.msra.mxu0 %v587
    %589 = vmatprep.subr.mxu0 0.0
    %590 = vmatpush2.msra.mxu0 0.0
    %591 = vmatprep.subr.mxu0 0.0
    %592 = vmatpush2.msra.mxu0 0.0
    %593 = vmatprep.subr.mxu0 0.0
    %594 = vmatpush2.msra.mxu0 0.0
    %595 = vmatprep.subr.mxu0 0.0
    %596 = vmatpush2.msra.mxu0 0.0
    %597 = vmatprep.subr.mxu0 0.0
    %598 = vmatpush2.msra.mxu0 0.0
    %599 = vmatprep.subr.mxu0 0.0
    %600 = vmatpush2.msra.mxu0 0.0
    %601 = vmatprep.subr.mxu0 0.0
    %602 = vmatpush2.msra.mxu0 0.0
    %603 = vmatprep.subr.mxu0 0.0
    %604 = vmatpush2.msra.mxu0 0.0
    %605 = vmatprep.subr.mxu0 0.0
    %606 = vmatpush2.msra.mxu0 0.0
    %607 = vmatprep.subr.mxu0 0.0
    %608 = vmatpush2.msra.mxu0 0.0
    %609 = vmatprep.subr.mxu0 0.0
    %610 = vmatpush2.msra.mxu0 0.0
    %611 = vmatprep.subr.mxu0 0.0
    %612 = vmatpush2.msra.mxu0 0.0
    %613 = vmatprep.subr.mxu0 0.0
    %614 = vmatpush2.msra.mxu0 0.0
    %615 = vmatprep.subr.mxu0 0.0
    %616 = vmatpush2.msra.mxu0 0.0
    %617 = vmatprep.subr.mxu0 0.0
    %618 = vmatpush2.msra.mxu0 0.0
    %619 = vmatprep.subr.mxu0 0.0
    %620 = vmatpush2.msra.mxu0 0.0
    %621 = vmatprep.mubr.f32.mxu0 0.0
    %v622 = vand.u32 %v101, 4294901760
    %623 = vmatmul.mubr.f32.gmra.mxu0 %v622
    %v624 = vpop.f32.mrf.mxu0
    %v625 = vadd.f32 %v544, %v624
    %v626 = vpop.f32.mrf.mxu0
    %627 = vmatprep.mubr.f32.mxu0 0.0
    %v628 = vand.u32 %v104, 4294901760
    %629 = vmatmul.mubr.f32.gmra.mxu0 %v628
    %v630 = vpop.f32.mrf.mxu0
    %v631 = vadd.f32 %v550, %v630
    %v632 = vpop.f32.mrf.mxu0
    %633 = vdwg.mxu0
    %634 = vst.msk [vmem:[#allocation10] sm:$0xff] %vm99, %v625
    %635 = vst.msk [vmem:[#allocation10 + $0x8] sm:$0xff] %vm99, %v631
    %v636 = vld [vmem:[#allocation7] sm:$0xff]
    %v637 = vld [vmem:[#allocation7 + $0x8] sm:$0xff]
    %v638 = vld [vmem:[#allocation7 + $0x10] sm:$0xff]
    %v639 = vld [vmem:[#allocation7 + $0x18] sm:$0xff]
    %v640 = vld [vmem:[%s5] sm:$0x1]
    %v642 = vlaneseq
    %v643 = vshrl.u32 %v642, 7
    %v644 = vsub.s32 0, %v643
    %v645 = vrot.slane %v640, %v644
    %647 = vmatprep.subr.mxu0 0.0
    %648 = vmatpush1.msra.mxu0 0.0
    %649 = vmatprep.subr.mxu0 0.0
    %650 = vmatpush1.msra.mxu0 0.0
    %651 = vmatprep.subr.mxu0 0.0
    %652 = vmatpush1.msra.mxu0 0.0
    %653 = vmatprep.subr.mxu0 0.0
    %654 = vmatpush1.msra.mxu0 0.0
    %655 = vmatprep.subr.mxu0 0.0
    %656 = vmatpush1.msra.mxu0 0.0
    %657 = vmatprep.subr.mxu0 0.0
    %658 = vmatpush1.msra.mxu0 0.0
    %659 = vmatprep.subr.mxu0 0.0
    %660 = vmatpush1.msra.mxu0 0.0
    %661 = vmatprep.subr.mxu0 0.0
    %662 = vmatpush1.msra.mxu0 0.0
    %663 = vmatprep.subr.mxu0 0.0
    %664 = vmatpush1.msra.mxu0 0.0
    %665 = vmatprep.subr.mxu0 0.0
    %666 = vmatpush1.msra.mxu0 0.0
    %667 = vmatprep.subr.mxu0 0.0
    %668 = vmatpush1.msra.mxu0 0.0
    %669 = vmatprep.subr.mxu0 0.0
    %670 = vmatpush1.msra.mxu0 0.0
    %671 = vmatprep.subr.mxu0 0.0
    %v672 = vand.u32 %v639, 4294901760
    %673 = vmatpush1.msra.mxu0 %v672
    %674 = vmatprep.subr.mxu0 0.0
    %v675 = vand.u32 %v638, 4294901760
    %676 = vmatpush1.msra.mxu0 %v675
    %677 = vmatprep.subr.mxu0 0.0
    %v678 = vand.u32 %v637, 4294901760
    %679 = vmatpush1.msra.mxu0 %v678
    %680 = vmatprep.subr.mxu0 0.0
    %v681 = vand.u32 %v636, 4294901760
    %682 = vmatpush1.msra.mxu0 %v681
    %683 = vmatprep.subr.mxu0 0.0
    %684 = vmatpush2.msra.mxu0 0.0
    %685 = vmatprep.subr.mxu0 0.0
    %686 = vmatpush2.msra.mxu0 0.0
    %687 = vmatprep.subr.mxu0 0.0
    %688 = vmatpush2.msra.mxu0 0.0
    %689 = vmatprep.subr.mxu0 0.0
    %690 = vmatpush2.msra.mxu0 0.0
    %691 = vmatprep.subr.mxu0 0.0
    %692 = vmatpush2.msra.mxu0 0.0
    %693 = vmatprep.subr.mxu0 0.0
    %694 = vmatpush2.msra.mxu0 0.0
    %695 = vmatprep.subr.mxu0 0.0
    %696 = vmatpush2.msra.mxu0 0.0
    %697 = vmatprep.subr.mxu0 0.0
    %698 = vmatpush2.msra.mxu0 0.0
    %699 = vmatprep.subr.mxu0 0.0
    %700 = vmatpush2.msra.mxu0 0.0
    %701 = vmatprep.subr.mxu0 0.0
    %702 = vmatpush2.msra.mxu0 0.0
    %703 = vmatprep.subr.mxu0 0.0
    %704 = vmatpush2.msra.mxu0 0.0
    %705 = vmatprep.subr.mxu0 0.0
    %706 = vmatpush2.msra.mxu0 0.0
    %707 = vmatprep.subr.mxu0 0.0
    %708 = vmatpush2.msra.mxu0 0.0
    %709 = vmatprep.subr.mxu0 0.0
    %710 = vmatpush2.msra.mxu0 0.0
    %711 = vmatprep.subr.mxu0 0.0
    %712 = vmatpush2.msra.mxu0 0.0
    %713 = vmatprep.subr.mxu0 0.0
    %714 = vmatpush2.msra.mxu0 0.0
    %715 = vmatprep.mubr.f32.mxu0 0.0
    %v716 = vand.u32 %v101, 4294901760
    %v717 = vsub.f32 %v101, %v716
    %v718 = vand.u32 %v717, 4294901760
    %v719 = vsub.f32 %v717, %v718
    %v720 = vand.u32 %v719, 4294901760
    %721 = vmatmul.mubr.f32.gmra.mxu0 %v720
    %v722 = vpop.f32.mrf.mxu0
    %v723 = vadd.f32 %v645, %v722
    %v724 = vpop.f32.mrf.mxu0
    %725 = vmatprep.mubr.f32.mxu0 0.0
    %v726 = vand.u32 %v104, 4294901760
    %v727 = vsub.f32 %v104, %v726
    %v728 = vand.u32 %v727, 4294901760
    %v729 = vsub.f32 %v727, %v728
    %v730 = vand.u32 %v729, 4294901760
    %731 = vmatmul.mubr.f32.gmra.mxu0 %v730
    %v732 = vpop.f32.mrf.mxu0
    %v733 = vadd.f32 %v645, %v732
    %v734 = vpop.f32.mrf.mxu0
    %735 = vdwg.mxu0
    %736 = vmatprep.subr.mxu0 0.0
    %737 = vmatpush1.msra.mxu0 0.0
    %738 = vmatprep.subr.mxu0 0.0
    %739 = vmatpush1.msra.mxu0 0.0
    %740 = vmatprep.subr.mxu0 0.0
    %741 = vmatpush1.msra.mxu0 0.0
    %742 = vmatprep.subr.mxu0 0.0
    %743 = vmatpush1.msra.mxu0 0.0
    %744 = vmatprep.subr.mxu0 0.0
    %745 = vmatpush1.msra.mxu0 0.0
    %746 = vmatprep.subr.mxu0 0.0
    %747 = vmatpush1.msra.mxu0 0.0
    %748 = vmatprep.subr.mxu0 0.0
    %749 = vmatpush1.msra.mxu0 0.0
    %750 = vmatprep.subr.mxu0 0.0
    %751 = vmatpush1.msra.mxu0 0.0
    %752 = vmatprep.subr.mxu0 0.0
    %753 = vmatpush1.msra.mxu0 0.0
    %754 = vmatprep.subr.mxu0 0.0
    %755 = vmatpush1.msra.mxu0 0.0
    %756 = vmatprep.subr.mxu0 0.0
    %757 = vmatpush1.msra.mxu0 0.0
    %758 = vmatprep.subr.mxu0 0.0
    %759 = vmatpush1.msra.mxu0 0.0
    %760 = vmatprep.subr.mxu0 0.0
    %v761 = vand.u32 %v639, 4294901760
    %v762 = vsub.f32 %v639, %v761
    %v763 = vand.u32 %v762, 4294901760
    %v764 = vsub.f32 %v762, %v763
    %v765 = vand.u32 %v764, 4294901760
    %766 = vmatpush1.msra.mxu0 %v765
    %767 = vmatprep.subr.mxu0 0.0
    %v768 = vand.u32 %v638, 4294901760
    %v769 = vsub.f32 %v638, %v768
    %v770 = vand.u32 %v769, 4294901760
    %v771 = vsub.f32 %v769, %v770
    %v772 = vand.u32 %v771, 4294901760
    %773 = vmatpush1.msra.mxu0 %v772
    %774 = vmatprep.subr.mxu0 0.0
    %v775 = vand.u32 %v637, 4294901760
    %v776 = vsub.f32 %v637, %v775
    %v777 = vand.u32 %v776, 4294901760
    %v778 = vsub.f32 %v776, %v777
    %v779 = vand.u32 %v778, 4294901760
    %780 = vmatpush1.msra.mxu0 %v779
    %781 = vmatprep.subr.mxu0 0.0
    %v782 = vand.u32 %v636, 4294901760
    %v783 = vsub.f32 %v636, %v782
    %v784 = vand.u32 %v783, 4294901760
    %v785 = vsub.f32 %v783, %v784
    %v786 = vand.u32 %v785, 4294901760
    %787 = vmatpush1.msra.mxu0 %v786
    %788 = vmatprep.subr.mxu0 0.0
    %789 = vmatpush2.msra.mxu0 0.0
    %790 = vmatprep.subr.mxu0 0.0
    %791 = vmatpush2.msra.mxu0 0.0
    %792 = vmatprep.subr.mxu0 0.0
    %793 = vmatpush2.msra.mxu0 0.0
    %794 = vmatprep.subr.mxu0 0.0
    %795 = vmatpush2.msra.mxu0 0.0
    %796 = vmatprep.subr.mxu0 0.0
    %797 = vmatpush2.msra.mxu0 0.0
    %798 = vmatprep.subr.mxu0 0.0
    %799 = vmatpush2.msra.mxu0 0.0
    %800 = vmatprep.subr.mxu0 0.0
    %801 = vmatpush2.msra.mxu0 0.0
    %802 = vmatprep.subr.mxu0 0.0
    %803 = vmatpush2.msra.mxu0 0.0
    %804 = vmatprep.subr.mxu0 0.0
    %805 = vmatpush2.msra.mxu0 0.0
    %806 = vmatprep.subr.mxu0 0.0
    %807 = vmatpush2.msra.mxu0 0.0
    %808 = vmatprep.subr.mxu0 0.0
    %809 = vmatpush2.msra.mxu0 0.0
    %810 = vmatprep.subr.mxu0 0.0
    %811 = vmatpush2.msra.mxu0 0.0
    %812 = vmatprep.subr.mxu0 0.0
    %813 = vmatpush2.msra.mxu0 0.0
    %814 = vmatprep.subr.mxu0 0.0
    %815 = vmatpush2.msra.mxu0 0.0
    %816 = vmatprep.subr.mxu0 0.0
    %817 = vmatpush2.msra.mxu0 0.0
    %818 = vmatprep.subr.mxu0 0.0
    %819 = vmatpush2.msra.mxu0 0.0
    %820 = vmatprep.mubr.f32.mxu0 0.0
    %v821 = vand.u32 %v101, 4294901760
    %822 = vmatmul.mubr.f32.gmra.mxu0 %v821
    %v823 = vpop.f32.mrf.mxu0
    %v824 = vadd.f32 %v723, %v823
    %v825 = vpop.f32.mrf.mxu0
    %826 = vmatprep.mubr.f32.mxu0 0.0
    %v827 = vand.u32 %v104, 4294901760
    %828 = vmatmul.mubr.f32.gmra.mxu0 %v827
    %v829 = vpop.f32.mrf.mxu0
    %v830 = vadd.f32 %v733, %v829
    %v831 = vpop.f32.mrf.mxu0
    %832 = vdwg.mxu0
    %833 = vmatprep.subr.mxu0 0.0
    %834 = vmatpush1.msra.mxu0 0.0
    %835 = vmatprep.subr.mxu0 0.0
    %836 = vmatpush1.msra.mxu0 0.0
    %837 = vmatprep.subr.mxu0 0.0
    %838 = vmatpush1.msra.mxu0 0.0
    %839 = vmatprep.subr.mxu0 0.0
    %840 = vmatpush1.msra.mxu0 0.0
    %841 = vmatprep.subr.mxu0 0.0
    %842 = vmatpush1.msra.mxu0 0.0
    %843 = vmatprep.subr.mxu0 0.0
    %844 = vmatpush1.msra.mxu0 0.0
    %845 = vmatprep.subr.mxu0 0.0
    %846 = vmatpush1.msra.mxu0 0.0
    %847 = vmatprep.subr.mxu0 0.0
    %848 = vmatpush1.msra.mxu0 0.0
    %849 = vmatprep.subr.mxu0 0.0
    %850 = vmatpush1.msra.mxu0 0.0
    %851 = vmatprep.subr.mxu0 0.0
    %852 = vmatpush1.msra.mxu0 0.0
    %853 = vmatprep.subr.mxu0 0.0
    %854 = vmatpush1.msra.mxu0 0.0
    %855 = vmatprep.subr.mxu0 0.0
    %856 = vmatpush1.msra.mxu0 0.0
    %857 = vmatprep.subr.mxu0 0.0
    %v858 = vand.u32 %v639, 4294901760
    %v859 = vsub.f32 %v639, %v858
    %860 = vmatpush1.msra.mxu0 %v859
    %861 = vmatprep.subr.mxu0 0.0
    %v862 = vand.u32 %v638, 4294901760
    %v863 = vsub.f32 %v638, %v862
    %864 = vmatpush1.msra.mxu0 %v863
    %865 = vmatprep.subr.mxu0 0.0
    %v866 = vand.u32 %v637, 4294901760
    %v867 = vsub.f32 %v637, %v866
    %868 = vmatpush1.msra.mxu0 %v867
    %869 = vmatprep.subr.mxu0 0.0
    %v870 = vand.u32 %v636, 4294901760
    %v871 = vsub.f32 %v636, %v870
    %872 = vmatpush1.msra.mxu0 %v871
    %873 = vmatprep.subr.mxu0 0.0
    %874 = vmatpush2.msra.mxu0 0.0
    %875 = vmatprep.subr.mxu0 0.0
    %876 = vmatpush2.msra.mxu0 0.0
    %877 = vmatprep.subr.mxu0 0.0
    %878 = vmatpush2.msra.mxu0 0.0
    %879 = vmatprep.subr.mxu0 0.0
    %880 = vmatpush2.msra.mxu0 0.0
    %881 = vmatprep.subr.mxu0 0.0
    %882 = vmatpush2.msra.mxu0 0.0
    %883 = vmatprep.subr.mxu0 0.0
    %884 = vmatpush2.msra.mxu0 0.0
    %885 = vmatprep.subr.mxu0 0.0
    %886 = vmatpush2.msra.mxu0 0.0
    %887 = vmatprep.subr.mxu0 0.0
    %888 = vmatpush2.msra.mxu0 0.0
    %889 = vmatprep.subr.mxu0 0.0
    %890 = vmatpush2.msra.mxu0 0.0
    %891 = vmatprep.subr.mxu0 0.0
    %892 = vmatpush2.msra.mxu0 0.0
    %893 = vmatprep.subr.mxu0 0.0
    %894 = vmatpush2.msra.mxu0 0.0
    %895 = vmatprep.subr.mxu0 0.0
    %896 = vmatpush2.msra.mxu0 0.0
    %897 = vmatprep.subr.mxu0 0.0
    %898 = vmatpush2.msra.mxu0 0.0
    %899 = vmatprep.subr.mxu0 0.0
    %900 = vmatpush2.msra.mxu0 0.0
    %901 = vmatprep.subr.mxu0 0.0
    %902 = vmatpush2.msra.mxu0 0.0
    %903 = vmatprep.subr.mxu0 0.0
    %904 = vmatpush2.msra.mxu0 0.0
    %905 = vmatprep.mubr.f32.mxu0 0.0
    %v906 = vand.u32 %v101, 4294901760
    %v907 = vsub.f32 %v101, %v906
    %908 = vmatmul.mubr.f32.gmra.mxu0 %v907
    %v909 = vpop.f32.mrf.mxu0
    %v910 = vadd.f32 %v824, %v909
    %v911 = vpop.f32.mrf.mxu0
    %912 = vmatprep.mubr.f32.mxu0 0.0
    %v913 = vand.u32 %v104, 4294901760
    %v914 = vsub.f32 %v104, %v913
    %915 = vmatmul.mubr.f32.gmra.mxu0 %v914
    %v916 = vpop.f32.mrf.mxu0
    %v917 = vadd.f32 %v830, %v916
    %v918 = vpop.f32.mrf.mxu0
    %919 = vdwg.mxu0
    %920 = vmatprep.subr.mxu0 0.0
    %921 = vmatpush1.msra.mxu0 0.0
    %922 = vmatprep.subr.mxu0 0.0
    %923 = vmatpush1.msra.mxu0 0.0
    %924 = vmatprep.subr.mxu0 0.0
    %925 = vmatpush1.msra.mxu0 0.0
    %926 = vmatprep.subr.mxu0 0.0
    %927 = vmatpush1.msra.mxu0 0.0
    %928 = vmatprep.subr.mxu0 0.0
    %929 = vmatpush1.msra.mxu0 0.0
    %930 = vmatprep.subr.mxu0 0.0
    %931 = vmatpush1.msra.mxu0 0.0
    %932 = vmatprep.subr.mxu0 0.0
    %933 = vmatpush1.msra.mxu0 0.0
    %934 = vmatprep.subr.mxu0 0.0
    %935 = vmatpush1.msra.mxu0 0.0
    %936 = vmatprep.subr.mxu0 0.0
    %937 = vmatpush1.msra.mxu0 0.0
    %938 = vmatprep.subr.mxu0 0.0
    %939 = vmatpush1.msra.mxu0 0.0
    %940 = vmatprep.subr.mxu0 0.0
    %941 = vmatpush1.msra.mxu0 0.0
    %942 = vmatprep.subr.mxu0 0.0
    %943 = vmatpush1.msra.mxu0 0.0
    %944 = vmatprep.subr.mxu0 0.0
    %v945 = vand.u32 %v639, 4294901760
    %946 = vmatpush1.msra.mxu0 %v945
    %947 = vmatprep.subr.mxu0 0.0
    %v948 = vand.u32 %v638, 4294901760
    %949 = vmatpush1.msra.mxu0 %v948
    %950 = vmatprep.subr.mxu0 0.0
    %v951 = vand.u32 %v637, 4294901760
    %952 = vmatpush1.msra.mxu0 %v951
    %953 = vmatprep.subr.mxu0 0.0
    %v954 = vand.u32 %v636, 4294901760
    %955 = vmatpush1.msra.mxu0 %v954
    %956 = vmatprep.subr.mxu0 0.0
    %957 = vmatpush2.msra.mxu0 0.0
    %958 = vmatprep.subr.mxu0 0.0
    %959 = vmatpush2.msra.mxu0 0.0
    %960 = vmatprep.subr.mxu0 0.0
    %961 = vmatpush2.msra.mxu0 0.0
    %962 = vmatprep.subr.mxu0 0.0
    %963 = vmatpush2.msra.mxu0 0.0
    %964 = vmatprep.subr.mxu0 0.0
    %965 = vmatpush2.msra.mxu0 0.0
    %966 = vmatprep.subr.mxu0 0.0
    %967 = vmatpush2.msra.mxu0 0.0
    %968 = vmatprep.subr.mxu0 0.0
    %969 = vmatpush2.msra.mxu0 0.0
    %970 = vmatprep.subr.mxu0 0.0
    %971 = vmatpush2.msra.mxu0 0.0
    %972 = vmatprep.subr.mxu0 0.0
    %973 = vmatpush2.msra.mxu0 0.0
    %974 = vmatprep.subr.mxu0 0.0
    %975 = vmatpush2.msra.mxu0 0.0
    %976 = vmatprep.subr.mxu0 0.0
    %977 = vmatpush2.msra.mxu0 0.0
    %978 = vmatprep.subr.mxu0 0.0
    %979 = vmatpush2.msra.mxu0 0.0
    %980 = vmatprep.subr.mxu0 0.0
    %981 = vmatpush2.msra.mxu0 0.0
    %982 = vmatprep.subr.mxu0 0.0
    %983 = vmatpush2.msra.mxu0 0.0
    %984 = vmatprep.subr.mxu0 0.0
    %985 = vmatpush2.msra.mxu0 0.0
    %986 = vmatprep.subr.mxu0 0.0
    %987 = vmatpush2.msra.mxu0 0.0
    %988 = vmatprep.mubr.f32.mxu0 0.0
    %v989 = vand.u32 %v101, 4294901760
    %v990 = vsub.f32 %v101, %v989
    %v991 = vand.u32 %v990, 4294901760
    %992 = vmatmul.mubr.f32.gmra.mxu0 %v991
    %v993 = vpop.f32.mrf.mxu0
    %v994 = vadd.f32 %v910, %v993
    %v995 = vpop.f32.mrf.mxu0
    %996 = vmatprep.mubr.f32.mxu0 0.0
    %v997 = vand.u32 %v104, 4294901760
    %v998 = vsub.f32 %v104, %v997
    %v999 = vand.u32 %v998, 4294901760
    %1000 = vmatmul.mubr.f32.gmra.mxu0 %v999
    %v1001 = vpop.f32.mrf.mxu0
    %v1002 = vadd.f32 %v917, %v1001
    %v1003 = vpop.f32.mrf.mxu0
    %1004 = vdwg.mxu0
    %1005 = vmatprep.subr.mxu0 0.0
    %1006 = vmatpush1.msra.mxu0 0.0
    %1007 = vmatprep.subr.mxu0 0.0
    %1008 = vmatpush1.msra.mxu0 0.0
    %1009 = vmatprep.subr.mxu0 0.0
    %1010 = vmatpush1.msra.mxu0 0.0
    %1011 = vmatprep.subr.mxu0 0.0
    %1012 = vmatpush1.msra.mxu0 0.0
    %1013 = vmatprep.subr.mxu0 0.0
    %1014 = vmatpush1.msra.mxu0 0.0
    %1015 = vmatprep.subr.mxu0 0.0
    %1016 = vmatpush1.msra.mxu0 0.0
    %1017 = vmatprep.subr.mxu0 0.0
    %1018 = vmatpush1.msra.mxu0 0.0
    %1019 = vmatprep.subr.mxu0 0.0
    %1020 = vmatpush1.msra.mxu0 0.0
    %1021 = vmatprep.subr.mxu0 0.0
    %1022 = vmatpush1.msra.mxu0 0.0
    %1023 = vmatprep.subr.mxu0 0.0
    %1024 = vmatpush1.msra.mxu0 0.0
    %1025 = vmatprep.subr.mxu0 0.0
    %1026 = vmatpush1.msra.mxu0 0.0
    %1027 = vmatprep.subr.mxu0 0.0
    %1028 = vmatpush1.msra.mxu0 0.0
    %1029 = vmatprep.subr.mxu0 0.0
    %v1030 = vand.u32 %v639, 4294901760
    %v1031 = vsub.f32 %v639, %v1030
    %v1032 = vand.u32 %v1031, 4294901760
    %1033 = vmatpush1.msra.mxu0 %v1032
    %1034 = vmatprep.subr.mxu0 0.0
    %v1035 = vand.u32 %v638, 4294901760
    %v1036 = vsub.f32 %v638, %v1035
    %v1037 = vand.u32 %v1036, 4294901760
    %1038 = vmatpush1.msra.mxu0 %v1037
    %1039 = vmatprep.subr.mxu0 0.0
    %v1040 = vand.u32 %v637, 4294901760
    %v1041 = vsub.f32 %v637, %v1040
    %v1042 = vand.u32 %v1041, 4294901760
    %1043 = vmatpush1.msra.mxu0 %v1042
    %1044 = vmatprep.subr.mxu0 0.0
    %v1045 = vand.u32 %v636, 4294901760
    %v1046 = vsub.f32 %v636, %v1045
    %v1047 = vand.u32 %v1046, 4294901760
    %1048 = vmatpush1.msra.mxu0 %v1047
    %1049 = vmatprep.subr.mxu0 0.0
    %1050 = vmatpush2.msra.mxu0 0.0
    %1051 = vmatprep.subr.mxu0 0.0
    %1052 = vmatpush2.msra.mxu0 0.0
    %1053 = vmatprep.subr.mxu0 0.0
    %1054 = vmatpush2.msra.mxu0 0.0
    %1055 = vmatprep.subr.mxu0 0.0
    %1056 = vmatpush2.msra.mxu0 0.0
    %1057 = vmatprep.subr.mxu0 0.0
    %1058 = vmatpush2.msra.mxu0 0.0
    %1059 = vmatprep.subr.mxu0 0.0
    %1060 = vmatpush2.msra.mxu0 0.0
    %1061 = vmatprep.subr.mxu0 0.0
    %1062 = vmatpush2.msra.mxu0 0.0
    %1063 = vmatprep.subr.mxu0 0.0
    %1064 = vmatpush2.msra.mxu0 0.0
    %1065 = vmatprep.subr.mxu0 0.0
    %1066 = vmatpush2.msra.mxu0 0.0
    %1067 = vmatprep.subr.mxu0 0.0
    %1068 = vmatpush2.msra.mxu0 0.0
    %1069 = vmatprep.subr.mxu0 0.0
    %1070 = vmatpush2.msra.mxu0 0.0
    %1071 = vmatprep.subr.mxu0 0.0
    %1072 = vmatpush2.msra.mxu0 0.0
    %1073 = vmatprep.subr.mxu0 0.0
    %1074 = vmatpush2.msra.mxu0 0.0
    %1075 = vmatprep.subr.mxu0 0.0
    %1076 = vmatpush2.msra.mxu0 0.0
    %1077 = vmatprep.subr.mxu0 0.0
    %1078 = vmatpush2.msra.mxu0 0.0
    %1079 = vmatprep.subr.mxu0 0.0
    %1080 = vmatpush2.msra.mxu0 0.0
    %1081 = vmatprep.mubr.f32.mxu0 0.0
    %v1082 = vand.u32 %v101, 4294901760
    %1083 = vmatmul.mubr.f32.gmra.mxu0 %v1082
    %v1084 = vpop.f32.mrf.mxu0
    %v1085 = vadd.f32 %v994, %v1084
    %v1086 = vpop.f32.mrf.mxu0
    %1087 = vmatprep.mubr.f32.mxu0 0.0
    %v1088 = vand.u32 %v104, 4294901760
    %1089 = vmatmul.mubr.f32.gmra.mxu0 %v1088
    %v1090 = vpop.f32.mrf.mxu0
    %v1091 = vadd.f32 %v1002, %v1090
    %v1092 = vpop.f32.mrf.mxu0
    %1093 = vdwg.mxu0
    %1094 = vmatprep.subr.mxu0 0.0
    %1095 = vmatpush1.msra.mxu0 0.0
    %1096 = vmatprep.subr.mxu0 0.0
    %1097 = vmatpush1.msra.mxu0 0.0
    %1098 = vmatprep.subr.mxu0 0.0
    %1099 = vmatpush1.msra.mxu0 0.0
    %1100 = vmatprep.subr.mxu0 0.0
    %1101 = vmatpush1.msra.mxu0 0.0
    %1102 = vmatprep.subr.mxu0 0.0
    %1103 = vmatpush1.msra.mxu0 0.0
    %1104 = vmatprep.subr.mxu0 0.0
    %1105 = vmatpush1.msra.mxu0 0.0
    %1106 = vmatprep.subr.mxu0 0.0
    %1107 = vmatpush1.msra.mxu0 0.0
    %1108 = vmatprep.subr.mxu0 0.0
    %1109 = vmatpush1.msra.mxu0 0.0
    %1110 = vmatprep.subr.mxu0 0.0
    %1111 = vmatpush1.msra.mxu0 0.0
    %1112 = vmatprep.subr.mxu0 0.0
    %1113 = vmatpush1.msra.mxu0 0.0
    %1114 = vmatprep.subr.mxu0 0.0
    %1115 = vmatpush1.msra.mxu0 0.0
    %1116 = vmatprep.subr.mxu0 0.0
    %1117 = vmatpush1.msra.mxu0 0.0
    %1118 = vmatprep.subr.mxu0 0.0
    %v1119 = vand.u32 %v639, 4294901760
    %1120 = vmatpush1.msra.mxu0 %v1119
    %1121 = vmatprep.subr.mxu0 0.0
    %v1122 = vand.u32 %v638, 4294901760
    %1123 = vmatpush1.msra.mxu0 %v1122
    %1124 = vmatprep.subr.mxu0 0.0
    %v1125 = vand.u32 %v637, 4294901760
    %1126 = vmatpush1.msra.mxu0 %v1125
    %1127 = vmatprep.subr.mxu0 0.0
    %v1128 = vand.u32 %v636, 4294901760
    %1129 = vmatpush1.msra.mxu0 %v1128
    %1130 = vmatprep.subr.mxu0 0.0
    %1131 = vmatpush2.msra.mxu0 0.0
    %1132 = vmatprep.subr.mxu0 0.0
    %1133 = vmatpush2.msra.mxu0 0.0
    %1134 = vmatprep.subr.mxu0 0.0
    %1135 = vmatpush2.msra.mxu0 0.0
    %1136 = vmatprep.subr.mxu0 0.0
    %1137 = vmatpush2.msra.mxu0 0.0
    %1138 = vmatprep.subr.mxu0 0.0
    %1139 = vmatpush2.msra.mxu0 0.0
    %1140 = vmatprep.subr.mxu0 0.0
    %1141 = vmatpush2.msra.mxu0 0.0
    %1142 = vmatprep.subr.mxu0 0.0
    %1143 = vmatpush2.msra.mxu0 0.0
    %1144 = vmatprep.subr.mxu0 0.0
    %1145 = vmatpush2.msra.mxu0 0.0
    %1146 = vmatprep.subr.mxu0 0.0
    %1147 = vmatpush2.msra.mxu0 0.0
    %1148 = vmatprep.subr.mxu0 0.0
    %1149 = vmatpush2.msra.mxu0 0.0
    %1150 = vmatprep.subr.mxu0 0.0
    %1151 = vmatpush2.msra.mxu0 0.0
    %1152 = vmatprep.subr.mxu0 0.0
    %1153 = vmatpush2.msra.mxu0 0.0
    %1154 = vmatprep.subr.mxu0 0.0
    %1155 = vmatpush2.msra.mxu0 0.0
    %1156 = vmatprep.subr.mxu0 0.0
    %1157 = vmatpush2.msra.mxu0 0.0
    %1158 = vmatprep.subr.mxu0 0.0
    %1159 = vmatpush2.msra.mxu0 0.0
    %1160 = vmatprep.subr.mxu0 0.0
    %1161 = vmatpush2.msra.mxu0 0.0
    %1162 = vmatprep.mubr.f32.mxu0 0.0
    %v1163 = vand.u32 %v101, 4294901760
    %1164 = vmatmul.mubr.f32.gmra.mxu0 %v1163
    %v1165 = vpop.f32.mrf.mxu0
    %v1166 = vadd.f32 %v1085, %v1165
    %v1167 = vpop.f32.mrf.mxu0
    %1168 = vmatprep.mubr.f32.mxu0 0.0
    %v1169 = vand.u32 %v104, 4294901760
    %1170 = vmatmul.mubr.f32.gmra.mxu0 %v1169
    %v1171 = vpop.f32.mrf.mxu0
    %v1172 = vadd.f32 %v1091, %v1171
    %v1173 = vpop.f32.mrf.mxu0
    %1174 = vdwg.mxu0
    %1175 = vst.msk [vmem:[#allocation11] sm:$0xff] %vm99, %v1166
    %1176 = vst.msk [vmem:[#allocation11 + $0x8] sm:$0xff] %vm99, %v1172
    %v1177 = vld [vmem:[#allocation8] sm:$0xff]
    %v1178 = vld [vmem:[#allocation8 + $0x8] sm:$0xff]
    %v1179 = vld [vmem:[#allocation8 + $0x10] sm:$0xff]
    %v1180 = vld [vmem:[#allocation8 + $0x18] sm:$0xff]
    %v1181 = vld [vmem:[%s6] sm:$0x1]
    %v1183 = vlaneseq
    %v1184 = vshrl.u32 %v1183, 7
    %v1185 = vsub.s32 0, %v1184
    %v1186 = vrot.slane %v1181, %v1185
    %1188 = vmatprep.subr.mxu0 0.0
    %1189 = vmatpush1.msra.mxu0 0.0
    %1190 = vmatprep.subr.mxu0 0.0
    %1191 = vmatpush1.msra.mxu0 0.0
    %1192 = vmatprep.subr.mxu0 0.0
    %1193 = vmatpush1.msra.mxu0 0.0
    %1194 = vmatprep.subr.mxu0 0.0
    %1195 = vmatpush1.msra.mxu0 0.0
    %1196 = vmatprep.subr.mxu0 0.0
    %1197 = vmatpush1.msra.mxu0 0.0
    %1198 = vmatprep.subr.mxu0 0.0
    %1199 = vmatpush1.msra.mxu0 0.0
    %1200 = vmatprep.subr.mxu0 0.0
    %1201 = vmatpush1.msra.mxu0 0.0
    %1202 = vmatprep.subr.mxu0 0.0
    %1203 = vmatpush1.msra.mxu0 0.0
    %1204 = vmatprep.subr.mxu0 0.0
    %1205 = vmatpush1.msra.mxu0 0.0
    %1206 = vmatprep.subr.mxu0 0.0
    %1207 = vmatpush1.msra.mxu0 0.0
    %1208 = vmatprep.subr.mxu0 0.0
    %1209 = vmatpush1.msra.mxu0 0.0
    %1210 = vmatprep.subr.mxu0 0.0
    %1211 = vmatpush1.msra.mxu0 0.0
    %1212 = vmatprep.subr.mxu0 0.0
    %v1213 = vand.u32 %v1180, 4294901760
    %1214 = vmatpush1.msra.mxu0 %v1213
    %1215 = vmatprep.subr.mxu0 0.0
    %v1216 = vand.u32 %v1179, 4294901760
    %1217 = vmatpush1.msra.mxu0 %v1216
    %1218 = vmatprep.subr.mxu0 0.0
    %v1219 = vand.u32 %v1178, 4294901760
    %1220 = vmatpush1.msra.mxu0 %v1219
    %1221 = vmatprep.subr.mxu0 0.0
    %v1222 = vand.u32 %v1177, 4294901760
    %1223 = vmatpush1.msra.mxu0 %v1222
    %1224 = vmatprep.subr.mxu0 0.0
    %1225 = vmatpush2.msra.mxu0 0.0
    %1226 = vmatprep.subr.mxu0 0.0
    %1227 = vmatpush2.msra.mxu0 0.0
    %1228 = vmatprep.subr.mxu0 0.0
    %1229 = vmatpush2.msra.mxu0 0.0
    %1230 = vmatprep.subr.mxu0 0.0
    %1231 = vmatpush2.msra.mxu0 0.0
    %1232 = vmatprep.subr.mxu0 0.0
    %1233 = vmatpush2.msra.mxu0 0.0
    %1234 = vmatprep.subr.mxu0 0.0
    %1235 = vmatpush2.msra.mxu0 0.0
    %1236 = vmatprep.subr.mxu0 0.0
    %1237 = vmatpush2.msra.mxu0 0.0
    %1238 = vmatprep.subr.mxu0 0.0
    %1239 = vmatpush2.msra.mxu0 0.0
    %1240 = vmatprep.subr.mxu0 0.0
    %1241 = vmatpush2.msra.mxu0 0.0
    %1242 = vmatprep.subr.mxu0 0.0
    %1243 = vmatpush2.msra.mxu0 0.0
    %1244 = vmatprep.subr.mxu0 0.0
    %1245 = vmatpush2.msra.mxu0 0.0
    %1246 = vmatprep.subr.mxu0 0.0
    %1247 = vmatpush2.msra.mxu0 0.0
    %1248 = vmatprep.subr.mxu0 0.0
    %1249 = vmatpush2.msra.mxu0 0.0
    %1250 = vmatprep.subr.mxu0 0.0
    %1251 = vmatpush2.msra.mxu0 0.0
    %1252 = vmatprep.subr.mxu0 0.0
    %1253 = vmatpush2.msra.mxu0 0.0
    %1254 = vmatprep.subr.mxu0 0.0
    %1255 = vmatpush2.msra.mxu0 0.0
    %1256 = vmatprep.mubr.f32.mxu0 0.0
    %v1257 = vand.u32 %v101, 4294901760
    %v1258 = vsub.f32 %v101, %v1257
    %v1259 = vand.u32 %v1258, 4294901760
    %v1260 = vsub.f32 %v1258, %v1259
    %v1261 = vand.u32 %v1260, 4294901760
    %1262 = vmatmul.mubr.f32.gmra.mxu0 %v1261
    %v1263 = vpop.f32.mrf.mxu0
    %v1264 = vadd.f32 %v1186, %v1263
    %v1265 = vpop.f32.mrf.mxu0
    %1266 = vmatprep.mubr.f32.mxu0 0.0
    %v1267 = vand.u32 %v104, 4294901760
    %v1268 = vsub.f32 %v104, %v1267
    %v1269 = vand.u32 %v1268, 4294901760
    %v1270 = vsub.f32 %v1268, %v1269
    %v1271 = vand.u32 %v1270, 4294901760
    %1272 = vmatmul.mubr.f32.gmra.mxu0 %v1271
    %v1273 = vpop.f32.mrf.mxu0
    %v1274 = vadd.f32 %v1186, %v1273
    %v1275 = vpop.f32.mrf.mxu0
    %1276 = vdwg.mxu0
    %1277 = vmatprep.subr.mxu0 0.0
    %1278 = vmatpush1.msra.mxu0 0.0
    %1279 = vmatprep.subr.mxu0 0.0
    %1280 = vmatpush1.msra.mxu0 0.0
    %1281 = vmatprep.subr.mxu0 0.0
    %1282 = vmatpush1.msra.mxu0 0.0
    %1283 = vmatprep.subr.mxu0 0.0
    %1284 = vmatpush1.msra.mxu0 0.0
    %1285 = vmatprep.subr.mxu0 0.0
    %1286 = vmatpush1.msra.mxu0 0.0
    %1287 = vmatprep.subr.mxu0 0.0
    %1288 = vmatpush1.msra.mxu0 0.0
    %1289 = vmatprep.subr.mxu0 0.0
    %1290 = vmatpush1.msra.mxu0 0.0
    %1291 = vmatprep.subr.mxu0 0.0
    %1292 = vmatpush1.msra.mxu0 0.0
    %1293 = vmatprep.subr.mxu0 0.0
    %1294 = vmatpush1.msra.mxu0 0.0
    %1295 = vmatprep.subr.mxu0 0.0
    %1296 = vmatpush1.msra.mxu0 0.0
    %1297 = vmatprep.subr.mxu0 0.0
    %1298 = vmatpush1.msra.mxu0 0.0
    %1299 = vmatprep.subr.mxu0 0.0
    %1300 = vmatpush1.msra.mxu0 0.0
    %1301 = vmatprep.subr.mxu0 0.0
    %v1302 = vand.u32 %v1180, 4294901760
    %v1303 = vsub.f32 %v1180, %v1302
    %v1304 = vand.u32 %v1303, 4294901760
    %v1305 = vsub.f32 %v1303, %v1304
    %v1306 = vand.u32 %v1305, 4294901760
    %1307 = vmatpush1.msra.mxu0 %v1306
    %1308 = vmatprep.subr.mxu0 0.0
    %v1309 = vand.u32 %v1179, 4294901760
    %v1310 = vsub.f32 %v1179, %v1309
    %v1311 = vand.u32 %v1310, 4294901760
    %v1312 = vsub.f32 %v1310, %v1311
    %v1313 = vand.u32 %v1312, 4294901760
    %1314 = vmatpush1.msra.mxu0 %v1313
    %1315 = vmatprep.subr.mxu0 0.0
    %v1316 = vand.u32 %v1178, 4294901760
    %v1317 = vsub.f32 %v1178, %v1316
    %v1318 = vand.u32 %v1317, 4294901760
    %v1319 = vsub.f32 %v1317, %v1318
    %v1320 = vand.u32 %v1319, 4294901760
    %1321 = vmatpush1.msra.mxu0 %v1320
    %1322 = vmatprep.subr.mxu0 0.0
    %v1323 = vand.u32 %v1177, 4294901760
    %v1324 = vsub.f32 %v1177, %v1323
    %v1325 = vand.u32 %v1324, 4294901760
    %v1326 = vsub.f32 %v1324, %v1325
    %v1327 = vand.u32 %v1326, 4294901760
    %1328 = vmatpush1.msra.mxu0 %v1327
    %1329 = vmatprep.subr.mxu0 0.0
    %1330 = vmatpush2.msra.mxu0 0.0
    %1331 = vmatprep.subr.mxu0 0.0
    %1332 = vmatpush2.msra.mxu0 0.0
    %1333 = vmatprep.subr.mxu0 0.0
    %1334 = vmatpush2.msra.mxu0 0.0
    %1335 = vmatprep.subr.mxu0 0.0
    %1336 = vmatpush2.msra.mxu0 0.0
    %1337 = vmatprep.subr.mxu0 0.0
    %1338 = vmatpush2.msra.mxu0 0.0
    %1339 = vmatprep.subr.mxu0 0.0
    %1340 = vmatpush2.msra.mxu0 0.0
    %1341 = vmatprep.subr.mxu0 0.0
    %1342 = vmatpush2.msra.mxu0 0.0
    %1343 = vmatprep.subr.mxu0 0.0
    %1344 = vmatpush2.msra.mxu0 0.0
    %1345 = vmatprep.subr.mxu0 0.0
    %1346 = vmatpush2.msra.mxu0 0.0
    %1347 = vmatprep.subr.mxu0 0.0
    %1348 = vmatpush2.msra.mxu0 0.0
    %1349 = vmatprep.subr.mxu0 0.0
    %1350 = vmatpush2.msra.mxu0 0.0
    %1351 = vmatprep.subr.mxu0 0.0
    %1352 = vmatpush2.msra.mxu0 0.0
    %1353 = vmatprep.subr.mxu0 0.0
    %1354 = vmatpush2.msra.mxu0 0.0
    %1355 = vmatprep.subr.mxu0 0.0
    %1356 = vmatpush2.msra.mxu0 0.0
    %1357 = vmatprep.subr.mxu0 0.0
    %1358 = vmatpush2.msra.mxu0 0.0
    %1359 = vmatprep.subr.mxu0 0.0
    %1360 = vmatpush2.msra.mxu0 0.0
    %1361 = vmatprep.mubr.f32.mxu0 0.0
    %v1362 = vand.u32 %v101, 4294901760
    %1363 = vmatmul.mubr.f32.gmra.mxu0 %v1362
    %v1364 = vpop.f32.mrf.mxu0
    %v1365 = vadd.f32 %v1264, %v1364
    %v1366 = vpop.f32.mrf.mxu0
    %1367 = vmatprep.mubr.f32.mxu0 0.0
    %v1368 = vand.u32 %v104, 4294901760
    %1369 = vmatmul.mubr.f32.gmra.mxu0 %v1368
    %v1370 = vpop.f32.mrf.mxu0
    %v1371 = vadd.f32 %v1274, %v1370
    %v1372 = vpop.f32.mrf.mxu0
    %1373 = vdwg.mxu0
    %1374 = vmatprep.subr.mxu0 0.0
    %1375 = vmatpush1.msra.mxu0 0.0
    %1376 = vmatprep.subr.mxu0 0.0
    %1377 = vmatpush1.msra.mxu0 0.0
    %1378 = vmatprep.subr.mxu0 0.0
    %1379 = vmatpush1.msra.mxu0 0.0
    %1380 = vmatprep.subr.mxu0 0.0
    %1381 = vmatpush1.msra.mxu0 0.0
    %1382 = vmatprep.subr.mxu0 0.0
    %1383 = vmatpush1.msra.mxu0 0.0
    %1384 = vmatprep.subr.mxu0 0.0
    %1385 = vmatpush1.msra.mxu0 0.0
    %1386 = vmatprep.subr.mxu0 0.0
    %1387 = vmatpush1.msra.mxu0 0.0
    %1388 = vmatprep.subr.mxu0 0.0
    %1389 = vmatpush1.msra.mxu0 0.0
    %1390 = vmatprep.subr.mxu0 0.0
    %1391 = vmatpush1.msra.mxu0 0.0
    %1392 = vmatprep.subr.mxu0 0.0
    %1393 = vmatpush1.msra.mxu0 0.0
    %1394 = vmatprep.subr.mxu0 0.0
    %1395 = vmatpush1.msra.mxu0 0.0
    %1396 = vmatprep.subr.mxu0 0.0
    %1397 = vmatpush1.msra.mxu0 0.0
    %1398 = vmatprep.subr.mxu0 0.0
    %v1399 = vand.u32 %v1180, 4294901760
    %v1400 = vsub.f32 %v1180, %v1399
    %1401 = vmatpush1.msra.mxu0 %v1400
    %1402 = vmatprep.subr.mxu0 0.0
    %v1403 = vand.u32 %v1179, 4294901760
    %v1404 = vsub.f32 %v1179, %v1403
    %1405 = vmatpush1.msra.mxu0 %v1404
    %1406 = vmatprep.subr.mxu0 0.0
    %v1407 = vand.u32 %v1178, 4294901760
    %v1408 = vsub.f32 %v1178, %v1407
    %1409 = vmatpush1.msra.mxu0 %v1408
    %1410 = vmatprep.subr.mxu0 0.0
    %v1411 = vand.u32 %v1177, 4294901760
    %v1412 = vsub.f32 %v1177, %v1411
    %1413 = vmatpush1.msra.mxu0 %v1412
    %1414 = vmatprep.subr.mxu0 0.0
    %1415 = vmatpush2.msra.mxu0 0.0
    %1416 = vmatprep.subr.mxu0 0.0
    %1417 = vmatpush2.msra.mxu0 0.0
    %1418 = vmatprep.subr.mxu0 0.0
    %1419 = vmatpush2.msra.mxu0 0.0
    %1420 = vmatprep.subr.mxu0 0.0
    %1421 = vmatpush2.msra.mxu0 0.0
    %1422 = vmatprep.subr.mxu0 0.0
    %1423 = vmatpush2.msra.mxu0 0.0
    %1424 = vmatprep.subr.mxu0 0.0
    %1425 = vmatpush2.msra.mxu0 0.0
    %1426 = vmatprep.subr.mxu0 0.0
    %1427 = vmatpush2.msra.mxu0 0.0
    %1428 = vmatprep.subr.mxu0 0.0
    %1429 = vmatpush2.msra.mxu0 0.0
    %1430 = vmatprep.subr.mxu0 0.0
    %1431 = vmatpush2.msra.mxu0 0.0
    %1432 = vmatprep.subr.mxu0 0.0
    %1433 = vmatpush2.msra.mxu0 0.0
    %1434 = vmatprep.subr.mxu0 0.0
    %1435 = vmatpush2.msra.mxu0 0.0
    %1436 = vmatprep.subr.mxu0 0.0
    %1437 = vmatpush2.msra.mxu0 0.0
    %1438 = vmatprep.subr.mxu0 0.0
    %1439 = vmatpush2.msra.mxu0 0.0
    %1440 = vmatprep.subr.mxu0 0.0
    %1441 = vmatpush2.msra.mxu0 0.0
    %1442 = vmatprep.subr.mxu0 0.0
    %1443 = vmatpush2.msra.mxu0 0.0
    %1444 = vmatprep.subr.mxu0 0.0
    %1445 = vmatpush2.msra.mxu0 0.0
    %1446 = vmatprep.mubr.f32.mxu0 0.0
    %v1447 = vand.u32 %v101, 4294901760
    %v1448 = vsub.f32 %v101, %v1447
    %1449 = vmatmul.mubr.f32.gmra.mxu0 %v1448
    %v1450 = vpop.f32.mrf.mxu0
    %v1451 = vadd.f32 %v1365, %v1450
    %v1452 = vpop.f32.mrf.mxu0
    %1453 = vmatprep.mubr.f32.mxu0 0.0
    %v1454 = vand.u32 %v104, 4294901760
    %v1455 = vsub.f32 %v104, %v1454
    %1456 = vmatmul.mubr.f32.gmra.mxu0 %v1455
    %v1457 = vpop.f32.mrf.mxu0
    %v1458 = vadd.f32 %v1371, %v1457
    %v1459 = vpop.f32.mrf.mxu0
    %1460 = vdwg.mxu0
    %1461 = vmatprep.subr.mxu0 0.0
    %1462 = vmatpush1.msra.mxu0 0.0
    %1463 = vmatprep.subr.mxu0 0.0
    %1464 = vmatpush1.msra.mxu0 0.0
    %1465 = vmatprep.subr.mxu0 0.0
    %1466 = vmatpush1.msra.mxu0 0.0
    %1467 = vmatprep.subr.mxu0 0.0
    %1468 = vmatpush1.msra.mxu0 0.0
    %1469 = vmatprep.subr.mxu0 0.0
    %1470 = vmatpush1.msra.mxu0 0.0
    %1471 = vmatprep.subr.mxu0 0.0
    %1472 = vmatpush1.msra.mxu0 0.0
    %1473 = vmatprep.subr.mxu0 0.0
    %1474 = vmatpush1.msra.mxu0 0.0
    %1475 = vmatprep.subr.mxu0 0.0
    %1476 = vmatpush1.msra.mxu0 0.0
    %1477 = vmatprep.subr.mxu0 0.0
    %1478 = vmatpush1.msra.mxu0 0.0
    %1479 = vmatprep.subr.mxu0 0.0
    %1480 = vmatpush1.msra.mxu0 0.0
    %1481 = vmatprep.subr.mxu0 0.0
    %1482 = vmatpush1.msra.mxu0 0.0
    %1483 = vmatprep.subr.mxu0 0.0
    %1484 = vmatpush1.msra.mxu0 0.0
    %1485 = vmatprep.subr.mxu0 0.0
    %v1486 = vand.u32 %v1180, 4294901760
    %1487 = vmatpush1.msra.mxu0 %v1486
    %1488 = vmatprep.subr.mxu0 0.0
    %v1489 = vand.u32 %v1179, 4294901760
    %1490 = vmatpush1.msra.mxu0 %v1489
    %1491 = vmatprep.subr.mxu0 0.0
    %v1492 = vand.u32 %v1178, 4294901760
    %1493 = vmatpush1.msra.mxu0 %v1492
    %1494 = vmatprep.subr.mxu0 0.0
    %v1495 = vand.u32 %v1177, 4294901760
    %1496 = vmatpush1.msra.mxu0 %v1495
    %1497 = vmatprep.subr.mxu0 0.0
    %1498 = vmatpush2.msra.mxu0 0.0
    %1499 = vmatprep.subr.mxu0 0.0
    %1500 = vmatpush2.msra.mxu0 0.0
    %1501 = vmatprep.subr.mxu0 0.0
    %1502 = vmatpush2.msra.mxu0 0.0
    %1503 = vmatprep.subr.mxu0 0.0
    %1504 = vmatpush2.msra.mxu0 0.0
    %1505 = vmatprep.subr.mxu0 0.0
    %1506 = vmatpush2.msra.mxu0 0.0
    %1507 = vmatprep.subr.mxu0 0.0
    %1508 = vmatpush2.msra.mxu0 0.0
    %1509 = vmatprep.subr.mxu0 0.0
    %1510 = vmatpush2.msra.mxu0 0.0
    %1511 = vmatprep.subr.mxu0 0.0
    %1512 = vmatpush2.msra.mxu0 0.0
    %1513 = vmatprep.subr.mxu0 0.0
    %1514 = vmatpush2.msra.mxu0 0.0
    %1515 = vmatprep.subr.mxu0 0.0
    %1516 = vmatpush2.msra.mxu0 0.0
    %1517 = vmatprep.subr.mxu0 0.0
    %1518 = vmatpush2.msra.mxu0 0.0
    %1519 = vmatprep.subr.mxu0 0.0
    %1520 = vmatpush2.msra.mxu0 0.0
    %1521 = vmatprep.subr.mxu0 0.0
    %1522 = vmatpush2.msra.mxu0 0.0
    %1523 = vmatprep.subr.mxu0 0.0
    %1524 = vmatpush2.msra.mxu0 0.0
    %1525 = vmatprep.subr.mxu0 0.0
    %1526 = vmatpush2.msra.mxu0 0.0
    %1527 = vmatprep.subr.mxu0 0.0
    %1528 = vmatpush2.msra.mxu0 0.0
    %1529 = vmatprep.mubr.f32.mxu0 0.0
    %v1530 = vand.u32 %v101, 4294901760
    %v1531 = vsub.f32 %v101, %v1530
    %v1532 = vand.u32 %v1531, 4294901760
    %1533 = vmatmul.mubr.f32.gmra.mxu0 %v1532
    %v1534 = vpop.f32.mrf.mxu0
    %v1535 = vadd.f32 %v1451, %v1534
    %v1536 = vpop.f32.mrf.mxu0
    %1537 = vmatprep.mubr.f32.mxu0 0.0
    %v1538 = vand.u32 %v104, 4294901760
    %v1539 = vsub.f32 %v104, %v1538
    %v1540 = vand.u32 %v1539, 4294901760
    %1541 = vmatmul.mubr.f32.gmra.mxu0 %v1540
    %v1542 = vpop.f32.mrf.mxu0
    %v1543 = vadd.f32 %v1458, %v1542
    %v1544 = vpop.f32.mrf.mxu0
    %1545 = vdwg.mxu0
    %1546 = vmatprep.subr.mxu0 0.0
    %1547 = vmatpush1.msra.mxu0 0.0
    %1548 = vmatprep.subr.mxu0 0.0
    %1549 = vmatpush1.msra.mxu0 0.0
    %1550 = vmatprep.subr.mxu0 0.0
    %1551 = vmatpush1.msra.mxu0 0.0
    %1552 = vmatprep.subr.mxu0 0.0
    %1553 = vmatpush1.msra.mxu0 0.0
    %1554 = vmatprep.subr.mxu0 0.0
    %1555 = vmatpush1.msra.mxu0 0.0
    %1556 = vmatprep.subr.mxu0 0.0
    %1557 = vmatpush1.msra.mxu0 0.0
    %1558 = vmatprep.subr.mxu0 0.0
    %1559 = vmatpush1.msra.mxu0 0.0
    %1560 = vmatprep.subr.mxu0 0.0
    %1561 = vmatpush1.msra.mxu0 0.0
    %1562 = vmatprep.subr.mxu0 0.0
    %1563 = vmatpush1.msra.mxu0 0.0
    %1564 = vmatprep.subr.mxu0 0.0
    %1565 = vmatpush1.msra.mxu0 0.0
    %1566 = vmatprep.subr.mxu0 0.0
    %1567 = vmatpush1.msra.mxu0 0.0
    %1568 = vmatprep.subr.mxu0 0.0
    %1569 = vmatpush1.msra.mxu0 0.0
    %1570 = vmatprep.subr.mxu0 0.0
    %v1571 = vand.u32 %v1180, 4294901760
    %v1572 = vsub.f32 %v1180, %v1571
    %v1573 = vand.u32 %v1572, 4294901760
    %1574 = vmatpush1.msra.mxu0 %v1573
    %1575 = vmatprep.subr.mxu0 0.0
    %v1576 = vand.u32 %v1179, 4294901760
    %v1577 = vsub.f32 %v1179, %v1576
    %v1578 = vand.u32 %v1577, 4294901760
    %1579 = vmatpush1.msra.mxu0 %v1578
    %1580 = vmatprep.subr.mxu0 0.0
    %v1581 = vand.u32 %v1178, 4294901760
    %v1582 = vsub.f32 %v1178, %v1581
    %v1583 = vand.u32 %v1582, 4294901760
    %1584 = vmatpush1.msra.mxu0 %v1583
    %1585 = vmatprep.subr.mxu0 0.0
    %v1586 = vand.u32 %v1177, 4294901760
    %v1587 = vsub.f32 %v1177, %v1586
    %v1588 = vand.u32 %v1587, 4294901760
    %1589 = vmatpush1.msra.mxu0 %v1588
    %1590 = vmatprep.subr.mxu0 0.0
    %1591 = vmatpush2.msra.mxu0 0.0
    %1592 = vmatprep.subr.mxu0 0.0
    %1593 = vmatpush2.msra.mxu0 0.0
    %1594 = vmatprep.subr.mxu0 0.0
    %1595 = vmatpush2.msra.mxu0 0.0
    %1596 = vmatprep.subr.mxu0 0.0
    %1597 = vmatpush2.msra.mxu0 0.0
    %1598 = vmatprep.subr.mxu0 0.0
    %1599 = vmatpush2.msra.mxu0 0.0
    %1600 = vmatprep.subr.mxu0 0.0
    %1601 = vmatpush2.msra.mxu0 0.0
    %1602 = vmatprep.subr.mxu0 0.0
    %1603 = vmatpush2.msra.mxu0 0.0
    %1604 = vmatprep.subr.mxu0 0.0
    %1605 = vmatpush2.msra.mxu0 0.0
    %1606 = vmatprep.subr.mxu0 0.0
    %1607 = vmatpush2.msra.mxu0 0.0
    %1608 = vmatprep.subr.mxu0 0.0
    %1609 = vmatpush2.msra.mxu0 0.0
    %1610 = vmatprep.subr.mxu0 0.0
    %1611 = vmatpush2.msra.mxu0 0.0
    %1612 = vmatprep.subr.mxu0 0.0
    %1613 = vmatpush2.msra.mxu0 0.0
    %1614 = vmatprep.subr.mxu0 0.0
    %1615 = vmatpush2.msra.mxu0 0.0
    %1616 = vmatprep.subr.mxu0 0.0
    %1617 = vmatpush2.msra.mxu0 0.0
    %1618 = vmatprep.subr.mxu0 0.0
    %1619 = vmatpush2.msra.mxu0 0.0
    %1620 = vmatprep.subr.mxu0 0.0
    %1621 = vmatpush2.msra.mxu0 0.0
    %1622 = vmatprep.mubr.f32.mxu0 0.0
    %v1623 = vand.u32 %v101, 4294901760
    %1624 = vmatmul.mubr.f32.gmra.mxu0 %v1623
    %v1625 = vpop.f32.mrf.mxu0
    %v1626 = vadd.f32 %v1535, %v1625
    %v1627 = vpop.f32.mrf.mxu0
    %1628 = vmatprep.mubr.f32.mxu0 0.0
    %v1629 = vand.u32 %v104, 4294901760
    %1630 = vmatmul.mubr.f32.gmra.mxu0 %v1629
    %v1631 = vpop.f32.mrf.mxu0
    %v1632 = vadd.f32 %v1543, %v1631
    %v1633 = vpop.f32.mrf.mxu0
    %1634 = vdwg.mxu0
    %1635 = vmatprep.subr.mxu0 0.0
    %1636 = vmatpush1.msra.mxu0 0.0
    %1637 = vmatprep.subr.mxu0 0.0
    %1638 = vmatpush1.msra.mxu0 0.0
    %1639 = vmatprep.subr.mxu0 0.0
    %1640 = vmatpush1.msra.mxu0 0.0
    %1641 = vmatprep.subr.mxu0 0.0
    %1642 = vmatpush1.msra.mxu0 0.0
    %1643 = vmatprep.subr.mxu0 0.0
    %1644 = vmatpush1.msra.mxu0 0.0
    %1645 = vmatprep.subr.mxu0 0.0
    %1646 = vmatpush1.msra.mxu0 0.0
    %1647 = vmatprep.subr.mxu0 0.0
    %1648 = vmatpush1.msra.mxu0 0.0
    %1649 = vmatprep.subr.mxu0 0.0
    %1650 = vmatpush1.msra.mxu0 0.0
    %1651 = vmatprep.subr.mxu0 0.0
    %1652 = vmatpush1.msra.mxu0 0.0
    %1653 = vmatprep.subr.mxu0 0.0
    %1654 = vmatpush1.msra.mxu0 0.0
    %1655 = vmatprep.subr.mxu0 0.0
    %1656 = vmatpush1.msra.mxu0 0.0
    %1657 = vmatprep.subr.mxu0 0.0
    %1658 = vmatpush1.msra.mxu0 0.0
    %1659 = vmatprep.subr.mxu0 0.0
    %v1660 = vand.u32 %v1180, 4294901760
    %1661 = vmatpush1.msra.mxu0 %v1660
    %1662 = vmatprep.subr.mxu0 0.0
    %v1663 = vand.u32 %v1179, 4294901760
    %1664 = vmatpush1.msra.mxu0 %v1663
    %1665 = vmatprep.subr.mxu0 0.0
    %v1666 = vand.u32 %v1178, 4294901760
    %1667 = vmatpush1.msra.mxu0 %v1666
    %1668 = vmatprep.subr.mxu0 0.0
    %v1669 = vand.u32 %v1177, 4294901760
    %1670 = vmatpush1.msra.mxu0 %v1669
    %1671 = vmatprep.subr.mxu0 0.0
    %1672 = vmatpush2.msra.mxu0 0.0
    %1673 = vmatprep.subr.mxu0 0.0
    %1674 = vmatpush2.msra.mxu0 0.0
    %1675 = vmatprep.subr.mxu0 0.0
    %1676 = vmatpush2.msra.mxu0 0.0
    %1677 = vmatprep.subr.mxu0 0.0
    %1678 = vmatpush2.msra.mxu0 0.0
    %1679 = vmatprep.subr.mxu0 0.0
    %1680 = vmatpush2.msra.mxu0 0.0
    %1681 = vmatprep.subr.mxu0 0.0
    %1682 = vmatpush2.msra.mxu0 0.0
    %1683 = vmatprep.subr.mxu0 0.0
    %1684 = vmatpush2.msra.mxu0 0.0
    %1685 = vmatprep.subr.mxu0 0.0
    %1686 = vmatpush2.msra.mxu0 0.0
    %1687 = vmatprep.subr.mxu0 0.0
    %1688 = vmatpush2.msra.mxu0 0.0
    %1689 = vmatprep.subr.mxu0 0.0
    %1690 = vmatpush2.msra.mxu0 0.0
    %1691 = vmatprep.subr.mxu0 0.0
    %1692 = vmatpush2.msra.mxu0 0.0
    %1693 = vmatprep.subr.mxu0 0.0
    %1694 = vmatpush2.msra.mxu0 0.0
    %1695 = vmatprep.subr.mxu0 0.0
    %1696 = vmatpush2.msra.mxu0 0.0
    %1697 = vmatprep.subr.mxu0 0.0
    %1698 = vmatpush2.msra.mxu0 0.0
    %1699 = vmatprep.subr.mxu0 0.0
    %1700 = vmatpush2.msra.mxu0 0.0
    %1701 = vmatprep.subr.mxu0 0.0
    %1702 = vmatpush2.msra.mxu0 0.0
    %1703 = vmatprep.mubr.f32.mxu0 0.0
    %v1704 = vand.u32 %v101, 4294901760
    %1705 = vmatmul.mubr.f32.gmra.mxu0 %v1704
    %v1706 = vpop.f32.mrf.mxu0
    %v1707 = vadd.f32 %v1626, %v1706
    %v1708 = vpop.f32.mrf.mxu0
    %1709 = vmatprep.mubr.f32.mxu0 0.0
    %v1710 = vand.u32 %v104, 4294901760
    %1711 = vmatmul.mubr.f32.gmra.mxu0 %v1710
    %v1712 = vpop.f32.mrf.mxu0
    %v1713 = vadd.f32 %v1632, %v1712
    %v1714 = vpop.f32.mrf.mxu0
    %1715 = vdwg.mxu0
    %1716 = vst.msk [vmem:[#allocation13] sm:$0xff] %vm99, %v1707
    %1717 = vst.msk [vmem:[#allocation13 + $0x8] sm:$0xff] %vm99, %v1713
    // Predicated region
    $region46: #{tpu_custom_call.1} parent=1 // pred_check
      _
    $region47: #{tpu_custom_call.1} parent=1 // pred_check_branch
      %1719 = sbr.rel (0) target = $region49
    $region48: #{tpu_custom_call.1} parent=1 // pred_region
      %s1721 = ssub.s32 256, 256
      %1722 = vsyncadd [#allocation4], %s1721
      %s1723 = sshll.u32 [#allocation10], 4
      %s1724 = int_to_ptr.vmem [resolvable:$true] %s1723
      %1729 = dma.vmem_to_hbm [thread:$0]  %s1724, 256, %s7, [#allocation4], 128, 128, 8
    $region49: #{tpu_custom_call.1} parent=1 // pred_fallthru
      _
    // Predicated region
    $region50: #{tpu_custom_call.1} parent=1 // pred_check
      _
    $region51: #{tpu_custom_call.1} parent=1 // pred_check_branch
      %1731 = sbr.rel (0) target = $region53
    $region52: #{tpu_custom_call.1} parent=1 // pred_region
      %s1733 = ssub.s32 256, 256
      %1734 = vsyncadd [#allocation12], %s1733
      %s1735 = sshll.u32 [#allocation11], 4
      %s1736 = int_to_ptr.vmem [resolvable:$true] %s1735
      %1741 = dma.vmem_to_hbm [thread:$0]  %s1736, 256, %s8, [#allocation12], 128, 128, 8
    $region53: #{tpu_custom_call.1} parent=1 // pred_fallthru
      _
    // Predicated region
    $region54: #{tpu_custom_call.1} parent=1 // pred_check
      _
    $region55: #{tpu_custom_call.1} parent=1 // pred_check_branch
      %1743 = sbr.rel (0) target = $region57
    $region56: #{tpu_custom_call.1} parent=1 // pred_region
      %s1745 = ssub.s32 256, 256
      %1746 = vsyncadd [#allocation12], %s1745
      %s1747 = sshll.u32 [#allocation13], 4
      %s1748 = int_to_ptr.vmem [resolvable:$true] %s1747
      %1753 = dma.vmem_to_hbm [thread:$0]  %s1748, 256, %s9, [#allocation12], 128, 128, 8
    $region57: #{tpu_custom_call.1} parent=1 // pred_fallthru
      _
    // Predicated region
    $region58: #{tpu_custom_call.1} parent=1 // pred_check
      _
    $region59: #{tpu_custom_call.1} parent=1 // pred_check_branch
      %1755 = sbr.rel (0) target = $region61
    $region60: #{tpu_custom_call.1} parent=1 // pred_region
      %1756 = dma.done [#allocation4], 256
    $region61: #{tpu_custom_call.1} parent=1 // pred_fallthru
      _
    // Predicated region
    $region62: #{tpu_custom_call.1} parent=1 // pred_check
      _
    $region63: #{tpu_custom_call.1} parent=1 // pred_check_branch
      %1758 = sbr.rel (0) target = $region65
    $region64: #{tpu_custom_call.1} parent=1 // pred_region
      %1759 = dma.done [#allocation12], 256
    $region65: #{tpu_custom_call.1} parent=1 // pred_fallthru
      _
    // Predicated region
    $region66: #{tpu_custom_call.1} parent=1 // pred_check
      _
    $region67: #{tpu_custom_call.1} parent=1 // pred_check_branch
      %1761 = sbr.rel (0) target = $region69
    $region68: #{tpu_custom_call.1} parent=1 // pred_region
      %1762 = dma.done [#allocation12], 256
    $region69: #{tpu_custom_call.1} parent=1 // pred_fallthru
      _
    %1763 = vsyncpa [#allocation3], 1
    %1764 = vsyncpa [#allocation6], 1
    %1765 = vsyncpa [#allocation9], 1
    %1766 = vsyncpa [#allocation4], 1
    %1767 = vsyncpa [#allocation12], 1

</llo_original>
